<compile_context>
chip_gen: v7x
topology: tpu7x:2x2x1
jax: 0.10.0
libtpu: 0.0.40
codegen_flags: <defaults>
</compile_context>

<pallas_src>
import math
from functools import partial

import jax
import jax.numpy as jnp
from jax import lax
from jax.experimental import pallas as pl
from jax.experimental.pallas import tpu as pltpu

BN_EPS = 1e-5
AGG_DTYPE = jnp.bfloat16   # operand dtype of all MXU matmuls (f32 accumulation)


def _round_up(v, m):
    return (v + m - 1) // m * m


def _nbytes(shape, dtype):
    return int(math.prod(shape)) * jnp.dtype(dtype).itemsize


# ----------------------------- fused Pallas kernel -----------------------------

def _fused_gsn_kernel(a_ref, x_ref, p_ref, w1x_ref, w1z_ref, w2_ref, misc_ref,
                      zcat_ref, g_ref, *, num_layers, hidden_pad):
    """Single invocation: all layers run here; every operand is VMEM-resident."""
    a = a_ref[...]                                              # [N, N], bf16
    p = p_ref[...]                                              # [Gp, N], f32

    # (A + I) @ x is reused by every layer (the x[:, :id_dim] term of cat(x_id, z)).
    aggx = jnp.dot(a, x_ref[...],
                   preferred_element_type=jnp.float32).astype(AGG_DTYPE)   # [N, d_pad]

    z_bf = None
    for layer in range(num_layers):                             # static unroll (L is tiny)
        misc = misc_ref[layer]                                  # [4, Hp] f32
        b1, b2 = misc[0:1, :], misc[1:2, :]
        gamma, beta = misc[2:3, :], misc[3:4, :]

        # GIN aggregation (eps = 0) of cat(x_id, z), split into two lane-dense matmuls.
        pre = jnp.dot(aggx, w1x_ref[layer], preferred_element_type=jnp.float32)
        if layer > 0:                                           # z == 0 at layer 0: skip
            agg_z = jnp.dot(a, z_bf,
                            preferred_element_type=jnp.float32).astype(AGG_DTYPE)
            pre = pre + jnp.dot(agg_z, w1z_ref[layer - 1],
                                preferred_element_type=jnp.float32)

        t = jnp.maximum(pre + b1, 0.0).astype(AGG_DTYPE)        # Linear -> ReLU
        h = jnp.dot(t, w2_ref[layer], preferred_element_type=jnp.float32) + b2

        # BatchNorm1d (training-mode batch statistics, biased variance) + final ReLU.
        mean = jnp.mean(h, axis=0, keepdims=True)
        var = jnp.mean((h - mean) ** 2, axis=0, keepdims=True)
        z = jnp.maximum((h - mean) * lax.rsqrt(var + BN_EPS) * gamma + beta, 0.0)

        z_bf = z.astype(AGG_DTYPE)                              # feeds the next layer
        lo = layer * hidden_pad                                 # static, 128-aligned
        zcat_ref[:, lo:lo + hidden_pad] = z                     # this layer's z_cat slice
        # global_add_pool folded in: this layer's slice of the pooled output.
        g_ref[:, lo:lo + hidden_pad] = jnp.dot(p, z, preferred_element_type=jnp.float32)


def graph_gsn_pallas(a_hat, x_pad, pool_mat, packed, *, num_layers, hidden_pad):
    n = x_pad.shape[0]
    g_pad = pool_mat.shape[0]
    l_hp = num_layers * hidden_pad

    operands = (a_hat, x_pad, pool_mat,
                packed["w1x"], packed["w1z"], packed["w2"], packed["misc"])
    out_shapes = (jax.ShapeDtypeStruct((n, l_hp), jnp.float32),     # z_cat (padded)
                  jax.ShapeDtypeStruct((g_pad, l_hp), jnp.float32))  # pooled g (padded)

    # VMEM budget from actual resident bytes (everything is single-buffered: no grid ->
    # no pipelining).  Cap at 64 MiB so the budget is valid on v7x (64 MiB physical VMEM);
    # v5e/v6e (128 MiB) can raise this toward ~96-112 MiB for the large-N tiled path.
    resident = sum(_nbytes(o.shape, o.dtype) for o in operands)
    resident += sum(_nbytes(o.shape, o.dtype) for o in out_shapes)
    vmem_budget = min(max(2 * resident + (4 << 20), 16 << 20), 64 << 20)

    vmem_spec = pl.BlockSpec(memory_space=pltpu.MemorySpace.VMEM)
    return pl.pallas_call(
        partial(_fused_gsn_kernel, num_layers=num_layers, hidden_pad=hidden_pad),
        out_shape=out_shapes,
        in_specs=[vmem_spec] * len(operands),
        out_specs=(vmem_spec, vmem_spec),
        compiler_params=pltpu.CompilerParams(vmem_limit_bytes=int(vmem_budget)),
    )(*operands)


def graph_gsn_forward(packed, x, a_hat_bf16, pool_mat, *, num_layers, hidden_dim,
                      hidden_pad, num_graphs):
    n = x.shape[0]
    d_pad = packed["w1x"].shape[1]
    x_pad = jnp.zeros((n, d_pad), AGG_DTYPE).at[:, :x.shape[1]].set(x.astype(AGG_DTYPE))

    zcat_pad, g_padded = graph_gsn_pallas(a_hat_bf16, x_pad, pool_mat, packed,
                                          num_layers=num_layers, hidden_pad=hidden_pad)
    # strip lane padding: [*, L*Hp] -> [*, L, Hp] -> [*, L*hidden_dim]
    z = zcat_pad.reshape(n, num_layers, hidden_pad)[:, :, :hidden_dim]
    z = z.reshape(n, num_layers * hidden_dim)
    g = g_padded.reshape(-1, num_layers, hidden_pad)[:num_graphs, :, :hidden_dim]
    g = g.reshape(num_graphs, num_layers * hidden_dim)
    return z, g


# ----------------------------- glue (plain JAX) -----------------------------

def build_dense_structures(edge_index, batch, num_nodes, num_graphs_pad):
    src, dst = edge_index[0], edge_index[1]
    adj = jnp.zeros((num_nodes, num_nodes), jnp.float32).at[dst, src].add(1.0)
    a_hat = adj + jnp.eye(num_nodes, dtype=jnp.float32)   # GINConv eps=0: (1+eps)x + neighbor sum
    pool = (jnp.arange(num_graphs_pad)[:, None] == batch[None, :]).astype(jnp.float32)
    return a_hat, pool


def init_linear(key, fan_in, fan_out):
    kw, kb = jax.random.split(key)
    bound = 1.0 / math.sqrt(fan_in)
    w = jax.random.uniform(kw, (fan_in, fan_out), jnp.float32, -bound, bound)
    b = jax.random.uniform(kb, (fan_out,), jnp.float32, -bound, bound)
    return w, b


def init_graph_gsn(key, id_dim, input_dim, hidden_dim, num_layers):
    params = []
    for i in range(num_layers):
        in_dim = input_dim if i == 0 else hidden_dim + id_dim
        key, k1, k2 = jax.random.split(key, 3)
        w1, b1 = init_linear(k1, in_dim, hidden_dim)
        w2, b2 = init_linear(k2, hidden_dim, hidden_dim)
        gamma = jnp.ones((hidden_dim,), jnp.float32)   # BatchNorm1d default init
        beta = jnp.zeros((hidden_dim,), jnp.float32)
        params.append((w1, b1, w2, b2, gamma, beta))
    # TODO(synk): self.project (Linear->ReLU->Linear) is never used in forward(); not applied.
    return params


def pack_params(params, *, id_dim, input_dim, hidden_dim, hidden_pad, d_pad):
    """Stack per-layer weights into lane-dense, zero-padded bf16 slabs; split W1 into the
    x[:, :id_dim] part (W1_x) and the z part (W1_z, layers >= 1 only); pack the small
    per-layer vectors (b1, b2, gamma, beta) into one f32 [L, 4, Hp] slab."""
    num_layers = len(params)
    w1x = jnp.zeros((num_layers, d_pad, hidden_pad), jnp.float32)
    w1z = jnp.zeros((max(num_layers - 1, 1), hidden_pad, hidden_pad), jnp.float32)
    w2 = jnp.zeros((num_layers, hidden_pad, hidden_pad), jnp.float32)
    misc = jnp.zeros((num_layers, 4, hidden_pad), jnp.float32)
    for i, (W1, B1, W2, B2, G, B) in enumerate(params):
        if i == 0:
            w1x = w1x.at[i, :input_dim, :hidden_dim].set(W1)
        else:
            w1x = w1x.at[i, :id_dim, :hidden_dim].set(W1[:id_dim])
            w1z = w1z.at[i - 1, :hidden_dim, :hidden_dim].set(W1[id_dim:])
        w2 = w2.at[i, :hidden_dim, :hidden_dim].set(W2)
        misc = misc.at[i, 0, :hidden_dim].set(B1)
        misc = misc.at[i, 1, :hidden_dim].set(B2)
        misc = misc.at[i, 2, :hidden_dim].set(G)
        misc = misc.at[i, 3, :hidden_dim].set(B)
    return dict(w1x=w1x.astype(AGG_DTYPE), w1z=w1z.astype(AGG_DTYPE),
                w2=w2.astype(AGG_DTYPE), misc=misc)


def reference_forward(params, x, a_hat, pool_mat_real, id_dim):
    """Plain-JAX reference using the SAME mixed precision as the kernel (bf16 matmul
    operands, f32 accumulation / elementwise), to isolate structural bugs."""
    a = a_hat.astype(AGG_DTYPE)
    z = x
    zs = []
    for i, (W1, B1, W2, B2, G, Bt) in enumerate(params):
        if i != 0:
            z = jnp.concatenate([x[:, :id_dim], z], axis=1)
        agg = jnp.dot(a, z.astype(AGG_DTYPE), preferred_element_type=jnp.float32)
        pre = jnp.dot(agg.astype(AGG_DTYPE), W1.astype(AGG_DTYPE),
                      preferred_element_type=jnp.float32) + B1
        t = jnp.maximum(pre, 0.0)
        h = jnp.dot(t.astype(AGG_DTYPE), W2.astype(AGG_DTYPE),
                    preferred_element_type=jnp.float32) + B2
        mean = h.mean(axis=0, keepdims=True)
        var = ((h - mean) ** 2).mean(axis=0, keepdims=True)
        z = jnp.maximum((h - mean) * lax.rsqrt(var + BN_EPS) * G + Bt, 0.0)
        zs.append(z)
    z_cat = jnp.concatenate(zs, axis=1)
    g = jnp.dot(pool_mat_real, z_cat, precision=lax.Precision.HIGHEST)
    return z_cat, g


# ----------------------------- main -----------------------------

if __name__ == "__main__":
    id_dim, input_dim, hidden_dim, num_layers = 4, 8, 32, 3
    num_nodes, num_edges, num_graphs = 16, 40, 2

    hidden_pad = _round_up(hidden_dim, 128)                 # lane-dense feature slabs
    d_pad = _round_up(max(input_dim, id_dim), 8)            # sublane-aligned only (review item 6)
    num_graphs_pad = _round_up(num_graphs, 8)

    key = jax.random.PRNGKey(0)
    key, kx, ke = jax.random.split(key, 3)
    x = jax.random.normal(kx, (num_nodes, input_dim), jnp.float32)
    edge_index = jax.random.randint(ke, (2, num_edges), 0, num_nodes, dtype=jnp.int32)
    batch = jnp.concatenate([jnp.zeros((num_nodes // 2,), jnp.int32),
                             jnp.ones((num_nodes - num_nodes // 2,), jnp.int32)])

    a_hat, pool_pad = build_dense_structures(edge_index, batch, num_nodes, num_graphs_pad)
    params = init_graph_gsn(key, id_dim, input_dim, hidden_dim, num_layers)
    packed = pack_params(params, id_dim=id_dim, input_dim=input_dim,
                         hidden_dim=hidden_dim, hidden_pad=hidden_pad, d_pad=d_pad)

    fwd = jax.jit(partial(graph_gsn_forward, num_layers=num_layers, hidden_dim=hidden_dim,
                          hidden_pad=hidden_pad, num_graphs=num_graphs))
    z_out, g_out = fwd(packed, x, a_hat.astype(AGG_DTYPE), pool_pad)
    jax.block_until_ready((z_out, g_out))

    assert z_out.shape == (num_nodes, hidden_dim * num_layers)
    assert g_out.shape == (num_graphs, hidden_dim * num_layers)

    # Correctness vs a plain-JAX reference with matching mixed precision.  Tolerance is
    # loose because bf16 operands round independently along MXU vs XLA paths.
    z_ref, g_ref = reference_forward(params, x, a_hat, pool_pad[:num_graphs], id_dim)
    assert jnp.allclose(z_out, z_ref, rtol=5e-2, atol=5e-2), \
        f"z mismatch, max abs err = {jnp.max(jnp.abs(z_out - z_ref))}"
    assert jnp.allclose(g_out, g_ref, rtol=5e-2, atol=5e-2), \
        f"g mismatch, max abs err = {jnp.max(jnp.abs(g_out - g_ref))}"

    print("KERNEL_OK")
</pallas_src>

<mosaic_0001>
module attributes {stable_mosaic.version = 11 : i64} {
  func.func @_fused_gsn_kernel(%arg0: memref<16x16xbf16, #tpu.memory_space<vmem>>, %arg1: memref<16x8xbf16, #tpu.memory_space<vmem>>, %arg2: memref<8x16xf32, #tpu.memory_space<vmem>>, %arg3: memref<3x8x128xbf16, #tpu.memory_space<vmem>>, %arg4: memref<2x128x128xbf16, #tpu.memory_space<vmem>>, %arg5: memref<3x128x128xbf16, #tpu.memory_space<vmem>>, %arg6: memref<3x4x128xf32, #tpu.memory_space<vmem>>, %arg7: memref<16x384xf32, #tpu.memory_space<vmem>>, %arg8: memref<8x384xf32, #tpu.memory_space<vmem>>) attributes {dimension_semantics = [], scalar_prefetch = 0 : i64, scratch_operands = 0 : i64, tpu.core_type = #tpu.core_type<tc>} {
    %c0 = arith.constant 0 : index
    %c0_0 = arith.constant 0 : index
    %0 = vector.load %arg0[%c0, %c0_0] : memref<16x16xbf16, #tpu.memory_space<vmem>>, vector<16x16xbf16>
    %c0_1 = arith.constant 0 : index
    %c0_2 = arith.constant 0 : index
    %1 = vector.load %arg2[%c0_1, %c0_2] : memref<8x16xf32, #tpu.memory_space<vmem>>, vector<8x16xf32>
    %c0_3 = arith.constant 0 : index
    %c0_4 = arith.constant 0 : index
    %2 = vector.load %arg1[%c0_3, %c0_4] : memref<16x8xbf16, #tpu.memory_space<vmem>>, vector<16x8xbf16>
    %cst = arith.constant dense<0.000000e+00> : vector<16x8xf32>
    %3 = tpu.matmul %0, %2, %cst {dimension_numbers = #tpu.dot_dimension_numbers<[1], [0], [0], [1], [0, 0, 1, 1], [], []>} : vector<16x16xbf16>, vector<16x8xbf16>, vector<16x8xf32> -> vector<16x8xf32>
    %4 = arith.truncf %3 : vector<16x8xf32> to vector<16x8xbf16>
    %c0_5 = arith.constant 0 : index
    %c0_6 = arith.constant 0 : index
    %c0_7 = arith.constant 0 : index
    %5 = vector.load %arg6[%c0_5, %c0_6, %c0_7] : memref<3x4x128xf32, #tpu.memory_space<vmem>>, vector<1x4x128xf32>
    %6 = vector.shape_cast %5 : vector<1x4x128xf32> to vector<4x128xf32>
    %7 = vector.extract_strided_slice %6 {offsets = [0, 0], sizes = [1, 128], strides = [1, 1]} : vector<4x128xf32> to vector<1x128xf32>
    %8 = vector.extract_strided_slice %6 {offsets = [1, 0], sizes = [1, 128], strides = [1, 1]} : vector<4x128xf32> to vector<1x128xf32>
    %9 = vector.extract_strided_slice %6 {offsets = [2, 0], sizes = [1, 128], strides = [1, 1]} : vector<4x128xf32> to vector<1x128xf32>
    %10 = vector.extract_strided_slice %6 {offsets = [3, 0], sizes = [1, 128], strides = [1, 1]} : vector<4x128xf32> to vector<1x128xf32>
    %c0_8 = arith.constant 0 : index
    %c0_9 = arith.constant 0 : index
    %c0_10 = arith.constant 0 : index
    %11 = vector.load %arg3[%c0_8, %c0_9, %c0_10] : memref<3x8x128xbf16, #tpu.memory_space<vmem>>, vector<1x8x128xbf16>
    %12 = vector.shape_cast %11 : vector<1x8x128xbf16> to vector<8x128xbf16>
    %cst_11 = arith.constant dense<0.000000e+00> : vector<16x128xf32>
    %13 = tpu.matmul %4, %12, %cst_11 {dimension_numbers = #tpu.dot_dimension_numbers<[1], [0], [0], [1], [0, 0, 1, 1], [], []>} : vector<16x8xbf16>, vector<8x128xbf16>, vector<16x128xf32> -> vector<16x128xf32>
    %14 = vector.broadcast %7 : vector<1x128xf32> to vector<16x128xf32>
    %15 = arith.addf %13, %14 : vector<16x128xf32>
    %cst_12 = arith.constant 0.000000e+00 : f32
    %16 = vector.broadcast %cst_12 : f32 to vector<16x128xf32>
    %17 = arith.maximumf %15, %16 : vector<16x128xf32>
    %18 = arith.truncf %17 : vector<16x128xf32> to vector<16x128xbf16>
    %c0_13 = arith.constant 0 : index
    %c0_14 = arith.constant 0 : index
    %c0_15 = arith.constant 0 : index
    %19 = vector.load %arg5[%c0_13, %c0_14, %c0_15] : memref<3x128x128xbf16, #tpu.memory_space<vmem>>, vector<1x128x128xbf16>
    %20 = vector.shape_cast %19 : vector<1x128x128xbf16> to vector<128x128xbf16>
    %cst_16 = arith.constant dense<0.000000e+00> : vector<16x128xf32>
    %21 = tpu.matmul %18, %20, %cst_16 {dimension_numbers = #tpu.dot_dimension_numbers<[1], [0], [0], [1], [0, 0, 1, 1], [], []>} : vector<16x128xbf16>, vector<128x128xbf16>, vector<16x128xf32> -> vector<16x128xf32>
    %22 = vector.broadcast %8 : vector<1x128xf32> to vector<16x128xf32>
    %23 = arith.addf %21, %22 : vector<16x128xf32>
    %cst_17 = arith.constant dense<0.000000e+00> : vector<128xf32>
    %24 = vector.multi_reduction <add>, %23, %cst_17 [0] : vector<16x128xf32> to vector<128xf32>
    %25 = vector.shape_cast %24 : vector<128xf32> to vector<1x128xf32>
    %cst_18 = arith.constant 1.600000e+01 : f32
    %26 = vector.broadcast %cst_18 : f32 to vector<1x128xf32>
    %27 = arith.divf %25, %26 : vector<1x128xf32>
    %28 = vector.broadcast %27 : vector<1x128xf32> to vector<16x128xf32>
    %29 = arith.subf %23, %28 : vector<16x128xf32>
    %30 = arith.mulf %29, %29 : vector<16x128xf32>
    %cst_19 = arith.constant dense<0.000000e+00> : vector<128xf32>
    %31 = vector.multi_reduction <add>, %30, %cst_19 [0] : vector<16x128xf32> to vector<128xf32>
    %32 = vector.shape_cast %31 : vector<128xf32> to vector<1x128xf32>
    %cst_20 = arith.constant 1.600000e+01 : f32
    %33 = vector.broadcast %cst_20 : f32 to vector<1x128xf32>
    %34 = arith.divf %32, %33 : vector<1x128xf32>
    %35 = vector.broadcast %27 : vector<1x128xf32> to vector<16x128xf32>
    %36 = arith.subf %23, %35 : vector<16x128xf32>
    %cst_21 = arith.constant 9.99999974E-6 : f32
    %37 = vector.broadcast %cst_21 : f32 to vector<1x128xf32>
    %38 = arith.addf %34, %37 : vector<1x128xf32>
    %39 = math.rsqrt %38 : vector<1x128xf32>
    %40 = vector.broadcast %39 : vector<1x128xf32> to vector<16x128xf32>
    %41 = arith.mulf %36, %40 : vector<16x128xf32>
    %42 = vector.broadcast %9 : vector<1x128xf32> to vector<16x128xf32>
    %43 = arith.mulf %41, %42 : vector<16x128xf32>
    %44 = vector.broadcast %10 : vector<1x128xf32> to vector<16x128xf32>
    %45 = arith.addf %43, %44 : vector<16x128xf32>
    %cst_22 = arith.constant 0.000000e+00 : f32
    %46 = vector.broadcast %cst_22 : f32 to vector<16x128xf32>
    %47 = arith.maximumf %45, %46 : vector<16x128xf32>
    %48 = arith.truncf %47 : vector<16x128xf32> to vector<16x128xbf16>
    %c0_23 = arith.constant 0 : index
    %c0_24 = arith.constant 0 : index
    %49 = vector.load %arg7[%c0_23, %c0_24] : memref<16x384xf32, #tpu.memory_space<vmem>>, vector<16x128xf32>
    tpu.vector_store %arg7[%c0_23, %c0_24], %47 {strides = array<i32>} : memref<16x384xf32, #tpu.memory_space<vmem>>, vector<16x128xf32>,
    %cst_25 = arith.constant dense<0.000000e+00> : vector<8x128xf32>
    %50 = tpu.matmul %1, %47, %cst_25 {dimension_numbers = #tpu.dot_dimension_numbers<[1], [0], [0], [1], [0, 0, 1, 1], [], []>} : vector<8x16xf32>, vector<16x128xf32>, vector<8x128xf32> -> vector<8x128xf32>
    %c0_26 = arith.constant 0 : index
    %c0_27 = arith.constant 0 : index
    %51 = vector.load %arg8[%c0_26, %c0_27] : memref<8x384xf32, #tpu.memory_space<vmem>>, vector<8x128xf32>
    tpu.vector_store %arg8[%c0_26, %c0_27], %50 {strides = array<i32>} : memref<8x384xf32, #tpu.memory_space<vmem>>, vector<8x128xf32>,
    %c1 = arith.constant 1 : index
    %c0_28 = arith.constant 0 : index
    %c0_29 = arith.constant 0 : index
    %52 = vector.load %arg6[%c1, %c0_28, %c0_29] : memref<3x4x128xf32, #tpu.memory_space<vmem>>, vector<1x4x128xf32>
    %53 = vector.shape_cast %52 : vector<1x4x128xf32> to vector<4x128xf32>
    %54 = vector.extract_strided_slice %53 {offsets = [0, 0], sizes = [1, 128], strides = [1, 1]} : vector<4x128xf32> to vector<1x128xf32>
    %55 = vector.extract_strided_slice %53 {offsets = [1, 0], sizes = [1, 128], strides = [1, 1]} : vector<4x128xf32> to vector<1x128xf32>
    %56 = vector.extract_strided_slice %53 {offsets = [2, 0], sizes = [1, 128], strides = [1, 1]} : vector<4x128xf32> to vector<1x128xf32>
    %57 = vector.extract_strided_slice %53 {offsets = [3, 0], sizes = [1, 128], strides = [1, 1]} : vector<4x128xf32> to vector<1x128xf32>
    %c1_30 = arith.constant 1 : index
    %c0_31 = arith.constant 0 : index
    %c0_32 = arith.constant 0 : index
    %58 = vector.load %arg3[%c1_30, %c0_31, %c0_32] : memref<3x8x128xbf16, #tpu.memory_space<vmem>>, vector<1x8x128xbf16>
    %59 = vector.shape_cast %58 : vector<1x8x128xbf16> to vector<8x128xbf16>
    %cst_33 = arith.constant dense<0.000000e+00> : vector<16x128xf32>
    %60 = tpu.matmul %4, %59, %cst_33 {dimension_numbers = #tpu.dot_dimension_numbers<[1], [0], [0], [1], [0, 0, 1, 1], [], []>} : vector<16x8xbf16>, vector<8x128xbf16>, vector<16x128xf32> -> vector<16x128xf32>
    %cst_34 = arith.constant dense<0.000000e+00> : vector<16x128xf32>
    %61 = tpu.matmul %0, %48, %cst_34 {dimension_numbers = #tpu.dot_dimension_numbers<[1], [0], [0], [1], [0, 0, 1, 1], [], []>} : vector<16x16xbf16>, vector<16x128xbf16>, vector<16x128xf32> -> vector<16x128xf32>
    %62 = arith.truncf %61 : vector<16x128xf32> to vector<16x128xbf16>
    %c0_35 = arith.constant 0 : index
    %c0_36 = arith.constant 0 : index
    %c0_37 = arith.constant 0 : index
    %63 = vector.load %arg4[%c0_35, %c0_36, %c0_37] : memref<2x128x128xbf16, #tpu.memory_space<vmem>>, vector<1x128x128xbf16>
    %64 = vector.shape_cast %63 : vector<1x128x128xbf16> to vector<128x128xbf16>
    %cst_38 = arith.constant dense<0.000000e+00> : vector<16x128xf32>
    %65 = tpu.matmul %62, %64, %cst_38 {dimension_numbers = #tpu.dot_dimension_numbers<[1], [0], [0], [1], [0, 0, 1, 1], [], []>} : vector<16x128xbf16>, vector<128x128xbf16>, vector<16x128xf32> -> vector<16x128xf32>
    %66 = arith.addf %60, %65 : vector<16x128xf32>
    %67 = vector.broadcast %54 : vector<1x128xf32> to vector<16x128xf32>
    %68 = arith.addf %66, %67 : vector<16x128xf32>
    %cst_39 = arith.constant 0.000000e+00 : f32
    %69 = vector.broadcast %cst_39 : f32 to vector<16x128xf32>
    %70 = arith.maximumf %68, %69 : vector<16x128xf32>
    %71 = arith.truncf %70 : vector<16x128xf32> to vector<16x128xbf16>
    %c1_40 = arith.constant 1 : index
    %c0_41 = arith.constant 0 : index
    %c0_42 = arith.constant 0 : index
    %72 = vector.load %arg5[%c1_40, %c0_41, %c0_42] : memref<3x128x128xbf16, #tpu.memory_space<vmem>>, vector<1x128x128xbf16>
    %73 = vector.shape_cast %72 : vector<1x128x128xbf16> to vector<128x128xbf16>
    %cst_43 = arith.constant dense<0.000000e+00> : vector<16x128xf32>
    %74 = tpu.matmul %71, %73, %cst_43 {dimension_numbers = #tpu.dot_dimension_numbers<[1], [0], [0], [1], [0, 0, 1, 1], [], []>} : vector<16x128xbf16>, vector<128x128xbf16>, vector<16x128xf32> -> vector<16x128xf32>
    %75 = vector.broadcast %55 : vector<1x128xf32> to vector<16x128xf32>
    %76 = arith.addf %74, %75 : vector<16x128xf32>
    %cst_44 = arith.constant dense<0.000000e+00> : vector<128xf32>
    %77 = vector.multi_reduction <add>, %76, %cst_44 [0] : vector<16x128xf32> to vector<128xf32>
    %78 = vector.shape_cast %77 : vector<128xf32> to vector<1x128xf32>
    %cst_45 = arith.constant 1.600000e+01 : f32
    %79 = vector.broadcast %cst_45 : f32 to vector<1x128xf32>
    %80 = arith.divf %78, %79 : vector<1x128xf32>
    %81 = vector.broadcast %80 : vector<1x128xf32> to vector<16x128xf32>
    %82 = arith.subf %76, %81 : vector<16x128xf32>
    %83 = arith.mulf %82, %82 : vector<16x128xf32>
    %cst_46 = arith.constant dense<0.000000e+00> : vector<128xf32>
    %84 = vector.multi_reduction <add>, %83, %cst_46 [0] : vector<16x128xf32> to vector<128xf32>
    %85 = vector.shape_cast %84 : vector<128xf32> to vector<1x128xf32>
    %cst_47 = arith.constant 1.600000e+01 : f32
    %86 = vector.broadcast %cst_47 : f32 to vector<1x128xf32>
    %87 = arith.divf %85, %86 : vector<1x128xf32>
    %88 = vector.broadcast %80 : vector<1x128xf32> to vector<16x128xf32>
    %89 = arith.subf %76, %88 : vector<16x128xf32>
    %cst_48 = arith.constant 9.99999974E-6 : f32
    %90 = vector.broadcast %cst_48 : f32 to vector<1x128xf32>
    %91 = arith.addf %87, %90 : vector<1x128xf32>
    %92 = math.rsqrt %91 : vector<1x128xf32>
    %93 = vector.broadcast %92 : vector<1x128xf32> to vector<16x128xf32>
    %94 = arith.mulf %89, %93 : vector<16x128xf32>
    %95 = vector.broadcast %56 : vector<1x128xf32> to vector<16x128xf32>
    %96 = arith.mulf %94, %95 : vector<16x128xf32>
    %97 = vector.broadcast %57 : vector<1x128xf32> to vector<16x128xf32>
    %98 = arith.addf %96, %97 : vector<16x128xf32>
    %cst_49 = arith.constant 0.000000e+00 : f32
    %99 = vector.broadcast %cst_49 : f32 to vector<16x128xf32>
    %100 = arith.maximumf %98, %99 : vector<16x128xf32>
    %101 = arith.truncf %100 : vector<16x128xf32> to vector<16x128xbf16>
    %c0_50 = arith.constant 0 : index
    %c128 = arith.constant 128 : index
    %102 = vector.load %arg7[%c0_50, %c128] : memref<16x384xf32, #tpu.memory_space<vmem>>, vector<16x128xf32>
    tpu.vector_store %arg7[%c0_50, %c128], %100 {strides = array<i32>} : memref<16x384xf32, #tpu.memory_space<vmem>>, vector<16x128xf32>,
    %cst_51 = arith.constant dense<0.000000e+00> : vector<8x128xf32>
    %103 = tpu.matmul %1, %100, %cst_51 {dimension_numbers = #tpu.dot_dimension_numbers<[1], [0], [0], [1], [0, 0, 1, 1], [], []>} : vector<8x16xf32>, vector<16x128xf32>, vector<8x128xf32> -> vector<8x128xf32>
    %c0_52 = arith.constant 0 : index
    %c128_53 = arith.constant 128 : index
    %104 = vector.load %arg8[%c0_52, %c128_53] : memref<8x384xf32, #tpu.memory_space<vmem>>, vector<8x128xf32>
    tpu.vector_store %arg8[%c0_52, %c128_53], %103 {strides = array<i32>} : memref<8x384xf32, #tpu.memory_space<vmem>>, vector<8x128xf32>,
    %c2 = arith.constant 2 : index
    %c0_54 = arith.constant 0 : index
    %c0_55 = arith.constant 0 : index
    %105 = vector.load %arg6[%c2, %c0_54, %c0_55] : memref<3x4x128xf32, #tpu.memory_space<vmem>>, vector<1x4x128xf32>
    %106 = vector.shape_cast %105 : vector<1x4x128xf32> to vector<4x128xf32>
    %107 = vector.extract_strided_slice %106 {offsets = [0, 0], sizes = [1, 128], strides = [1, 1]} : vector<4x128xf32> to vector<1x128xf32>
    %108 = vector.extract_strided_slice %106 {offsets = [1, 0], sizes = [1, 128], strides = [1, 1]} : vector<4x128xf32> to vector<1x128xf32>
    %109 = vector.extract_strided_slice %106 {offsets = [2, 0], sizes = [1, 128], strides = [1, 1]} : vector<4x128xf32> to vector<1x128xf32>
    %110 = vector.extract_strided_slice %106 {offsets = [3, 0], sizes = [1, 128], strides = [1, 1]} : vector<4x128xf32> to vector<1x128xf32>
    %c2_56 = arith.constant 2 : index
    %c0_57 = arith.constant 0 : index
    %c0_58 = arith.constant 0 : index
    %111 = vector.load %arg3[%c2_56, %c0_57, %c0_58] : memref<3x8x128xbf16, #tpu.memory_space<vmem>>, vector<1x8x128xbf16>
    %112 = vector.shape_cast %111 : vector<1x8x128xbf16> to vector<8x128xbf16>
    %cst_59 = arith.constant dense<0.000000e+00> : vector<16x128xf32>
    %113 = tpu.matmul %4, %112, %cst_59 {dimension_numbers = #tpu.dot_dimension_numbers<[1], [0], [0], [1], [0, 0, 1, 1], [], []>} : vector<16x8xbf16>, vector<8x128xbf16>, vector<16x128xf32> -> vector<16x128xf32>
    %cst_60 = arith.constant dense<0.000000e+00> : vector<16x128xf32>
    %114 = tpu.matmul %0, %101, %cst_60 {dimension_numbers = #tpu.dot_dimension_numbers<[1], [0], [0], [1], [0, 0, 1, 1], [], []>} : vector<16x16xbf16>, vector<16x128xbf16>, vector<16x128xf32> -> vector<16x128xf32>
    %115 = arith.truncf %114 : vector<16x128xf32> to vector<16x128xbf16>
    %c1_61 = arith.constant 1 : index
    %c0_62 = arith.constant 0 : index
    %c0_63 = arith.constant 0 : index
    %116 = vector.load %arg4[%c1_61, %c0_62, %c0_63] : memref<2x128x128xbf16, #tpu.memory_space<vmem>>, vector<1x128x128xbf16>
    %117 = vector.shape_cast %116 : vector<1x128x128xbf16> to vector<128x128xbf16>
    %cst_64 = arith.constant dense<0.000000e+00> : vector<16x128xf32>
    %118 = tpu.matmul %115, %117, %cst_64 {dimension_numbers = #tpu.dot_dimension_numbers<[1], [0], [0], [1], [0, 0, 1, 1], [], []>} : vector<16x128xbf16>, vector<128x128xbf16>, vector<16x128xf32> -> vector<16x128xf32>
    %119 = arith.addf %113, %118 : vector<16x128xf32>
    %120 = vector.broadcast %107 : vector<1x128xf32> to vector<16x128xf32>
    %121 = arith.addf %119, %120 : vector<16x128xf32>
    %cst_65 = arith.constant 0.000000e+00 : f32
    %122 = vector.broadcast %cst_65 : f32 to vector<16x128xf32>
    %123 = arith.maximumf %121, %122 : vector<16x128xf32>
    %124 = arith.truncf %123 : vector<16x128xf32> to vector<16x128xbf16>
    %c2_66 = arith.constant 2 : index
    %c0_67 = arith.constant 0 : index
    %c0_68 = arith.constant 0 : index
    %125 = vector.load %arg5[%c2_66, %c0_67, %c0_68] : memref<3x128x128xbf16, #tpu.memory_space<vmem>>, vector<1x128x128xbf16>
    %126 = vector.shape_cast %125 : vector<1x128x128xbf16> to vector<128x128xbf16>
    %cst_69 = arith.constant dense<0.000000e+00> : vector<16x128xf32>
    %127 = tpu.matmul %124, %126, %cst_69 {dimension_numbers = #tpu.dot_dimension_numbers<[1], [0], [0], [1], [0, 0, 1, 1], [], []>} : vector<16x128xbf16>, vector<128x128xbf16>, vector<16x128xf32> -> vector<16x128xf32>
    %128 = vector.broadcast %108 : vector<1x128xf32> to vector<16x128xf32>
    %129 = arith.addf %127, %128 : vector<16x128xf32>
    %cst_70 = arith.constant dense<0.000000e+00> : vector<128xf32>
    %130 = vector.multi_reduction <add>, %129, %cst_70 [0] : vector<16x128xf32> to vector<128xf32>
    %131 = vector.shape_cast %130 : vector<128xf32> to vector<1x128xf32>
    %cst_71 = arith.constant 1.600000e+01 : f32
    %132 = vector.broadcast %cst_71 : f32 to vector<1x128xf32>
    %133 = arith.divf %131, %132 : vector<1x128xf32>
    %134 = vector.broadcast %133 : vector<1x128xf32> to vector<16x128xf32>
    %135 = arith.subf %129, %134 : vector<16x128xf32>
    %136 = arith.mulf %135, %135 : vector<16x128xf32>
    %cst_72 = arith.constant dense<0.000000e+00> : vector<128xf32>
    %137 = vector.multi_reduction <add>, %136, %cst_72 [0] : vector<16x128xf32> to vector<128xf32>
    %138 = vector.shape_cast %137 : vector<128xf32> to vector<1x128xf32>
    %cst_73 = arith.constant 1.600000e+01 : f32
    %139 = vector.broadcast %cst_73 : f32 to vector<1x128xf32>
    %140 = arith.divf %138, %139 : vector<1x128xf32>
    %141 = vector.broadcast %133 : vector<1x128xf32> to vector<16x128xf32>
    %142 = arith.subf %129, %141 : vector<16x128xf32>
    %cst_74 = arith.constant 9.99999974E-6 : f32
    %143 = vector.broadcast %cst_74 : f32 to vector<1x128xf32>
    %144 = arith.addf %140, %143 : vector<1x128xf32>
    %145 = math.rsqrt %144 : vector<1x128xf32>
    %146 = vector.broadcast %145 : vector<1x128xf32> to vector<16x128xf32>
    %147 = arith.mulf %142, %146 : vector<16x128xf32>
    %148 = vector.broadcast %109 : vector<1x128xf32> to vector<16x128xf32>
    %149 = arith.mulf %147, %148 : vector<16x128xf32>
    %150 = vector.broadcast %110 : vector<1x128xf32> to vector<16x128xf32>
    %151 = arith.addf %149, %150 : vector<16x128xf32>
    %cst_75 = arith.constant 0.000000e+00 : f32
    %152 = vector.broadcast %cst_75 : f32 to vector<16x128xf32>
    %153 = arith.maximumf %151, %152 : vector<16x128xf32>
    %c0_76 = arith.constant 0 : index
    %c256 = arith.constant 256 : index
    %154 = vector.load %arg7[%c0_76, %c256] : memref<16x384xf32, #tpu.memory_space<vmem>>, vector<16x128xf32>
    tpu.vector_store %arg7[%c0_76, %c256], %153 {strides = array<i32>} : memref<16x384xf32, #tpu.memory_space<vmem>>, vector<16x128xf32>,
    %cst_77 = arith.constant dense<0.000000e+00> : vector<8x128xf32>
    %155 = tpu.matmul %1, %153, %cst_77 {dimension_numbers = #tpu.dot_dimension_numbers<[1], [0], [0], [1], [0, 0, 1, 1], [], []>} : vector<8x16xf32>, vector<16x128xf32>, vector<8x128xf32> -> vector<8x128xf32>
    %c0_78 = arith.constant 0 : index
    %c256_79 = arith.constant 256 : index
    %156 = vector.load %arg8[%c0_78, %c256_79] : memref<8x384xf32, #tpu.memory_space<vmem>>, vector<8x128xf32>
    tpu.vector_store %arg8[%c0_78, %c256_79], %155 {strides = array<i32>} : memref<8x384xf32, #tpu.memory_space<vmem>>, vector<8x128xf32>,
    return
  }
}

</mosaic_0001>

<llo_original>
// kernel: graph_gsn_forward.1
$region0: #{graph_gsn_forward.1}
  #allocation0 [shape = 'u32[]', space=smem, size = 0x4, offset = 0x4, fixed_abs, tag = 'smem constant byte address 0x4 - core index']
  #allocation1 [shape = 'u32[144,128]{1,0:T(1,128)}', space=vmem, size = 0x12000, scoped, tag = 'internal scratch']
  %s0 = inlined_call_operand.vmem [shape: bf16[16,16], index: 0, kind: input, shape index: {}]
  %s1 = inlined_call_operand.vmem [shape: bf16[16,8], index: 1, kind: input, shape index: {}]
  %s2 = inlined_call_operand.vmem [shape: f32[8,16], index: 2, kind: input, shape index: {}]
  %s3 = inlined_call_operand.vmem [shape: bf16[3,8,128], index: 3, kind: input, shape index: {}]
  %s4 = inlined_call_operand.hbm [shape: bf16[2,128,128], index: 4, kind: input, shape index: {}]
  %s5 = inlined_call_operand.hbm [shape: bf16[3,128,128], index: 5, kind: input, shape index: {}]
  %s6 = inlined_call_operand.vmem [shape: f32[3,4,128], index: 6, kind: input, shape index: {}]
  %s7 = inlined_call_operand.vmem [shape: f32[16,384], index: 7, kind: output, shape index: {0}]
  %s8 = inlined_call_operand.vmem [shape: f32[8,384], index: 8, kind: output, shape index: {1}]
  %9 = xla_tuple %s7, %s8
  %s10 = sld [smem:[#allocation0]]
  $region54: #{graph_gsn_forward.1} parent=0
    _
  %s12 = ssub.s32 1, %s10
  %s13 = scalar_select 0, %s12, %s10
  $region1: #{graph_gsn_forward.1} parent=0
    #allocation2 [shape = 'u8[65536]{0}', space=vmem, size = 0x10000, scoped, tag = 'input window, operand 4, single buffered']
    #allocation3 [shape = 's32[1]{0}', space=sflag, size = 0x4, scoped, tag = 'scoped memory for graph_gsn_forward.1']
    #allocation4 [shape = 'u8[98304]{0}', space=vmem, size = 0x18000, scoped, tag = 'input window, operand 5, single buffered']
    #allocation5 [shape = 's32[1]{0}', space=sflag, size = 0x4, scoped, tag = 'scoped memory for graph_gsn_forward.1']
    %14 = vsyncpa [#allocation3], 0
    %15 = vsyncpa [#allocation5], 0
    // Predicated region
    $region2: #{graph_gsn_forward.1} parent=1 // pred_check
      _
    $region3: #{graph_gsn_forward.1} parent=1 // pred_check_branch
      %17 = sbr.rel (0) target = $region5
    $region4: #{graph_gsn_forward.1} parent=1 // pred_region
      _
    $region5: #{graph_gsn_forward.1} parent=1 // pred_fallthru
      _
    // Predicated region
    $region6: #{graph_gsn_forward.1} parent=1 // pred_check
      _
    $region7: #{graph_gsn_forward.1} parent=1 // pred_check_branch
      %19 = sbr.rel (0) target = $region9
    $region8: #{graph_gsn_forward.1} parent=1 // pred_region
      _
    $region9: #{graph_gsn_forward.1} parent=1 // pred_fallthru
      _
    // Predicated region
    $region10: #{graph_gsn_forward.1} parent=1 // pred_check
      _
    $region11: #{graph_gsn_forward.1} parent=1 // pred_check_branch
      %21 = sbr.rel (0) target = $region13
    $region12: #{graph_gsn_forward.1} parent=1 // pred_region
      _
    $region13: #{graph_gsn_forward.1} parent=1 // pred_fallthru
      _
    // Predicated region
    $region14: #{graph_gsn_forward.1} parent=1 // pred_check
      _
    $region15: #{graph_gsn_forward.1} parent=1 // pred_check_branch
      %23 = sbr.rel (0) target = $region17
    $region16: #{graph_gsn_forward.1} parent=1 // pred_region
      _
    $region17: #{graph_gsn_forward.1} parent=1 // pred_fallthru
      _
    // Predicated region
    $region18: #{graph_gsn_forward.1} parent=1 // pred_check
      _
    $region19: #{graph_gsn_forward.1} parent=1 // pred_check_branch
      %25 = sbr.rel (0) target = $region21
    $region20: #{graph_gsn_forward.1} parent=1 // pred_region
      %s27 = ssub.s32 2048, 2048
      %28 = vsyncadd [#allocation3], %s27
      %s29 = sshll.u32 [#allocation2], 4
      %s30 = int_to_ptr.vmem [resolvable:$true] %s29
      %35 = dma.hbm_to_vmem [thread:$0]  %s4, 2048, %s30, [#allocation3], 64, 64, 4
    $region21: #{graph_gsn_forward.1} parent=1 // pred_fallthru
      _
    // Predicated region
    $region22: #{graph_gsn_forward.1} parent=1 // pred_check
      _
    $region23: #{graph_gsn_forward.1} parent=1 // pred_check_branch
      %37 = sbr.rel (0) target = $region25
    $region24: #{graph_gsn_forward.1} parent=1 // pred_region
      %s39 = ssub.s32 3072, 3072
      %40 = vsyncadd [#allocation5], %s39
      %s41 = sshll.u32 [#allocation4], 4
      %s42 = int_to_ptr.vmem [resolvable:$true] %s41
      %47 = dma.hbm_to_vmem [thread:$0]  %s5, 3072, %s42, [#allocation5], 64, 64, 4
    $region25: #{graph_gsn_forward.1} parent=1 // pred_fallthru
      _
    // Predicated region
    $region26: #{graph_gsn_forward.1} parent=1 // pred_check
      _
    $region27: #{graph_gsn_forward.1} parent=1 // pred_check_branch
      %49 = sbr.rel (0) target = $region29
    $region28: #{graph_gsn_forward.1} parent=1 // pred_region
      _
    $region29: #{graph_gsn_forward.1} parent=1 // pred_fallthru
      _
    // Predicated region
    $region30: #{graph_gsn_forward.1} parent=1 // pred_check
      _
    $region31: #{graph_gsn_forward.1} parent=1 // pred_check_branch
      %51 = sbr.rel (0) target = $region33
    $region32: #{graph_gsn_forward.1} parent=1 // pred_region
      %52 = dma.done [#allocation3], 2048
    $region33: #{graph_gsn_forward.1} parent=1 // pred_fallthru
      _
    // Predicated region
    $region34: #{graph_gsn_forward.1} parent=1 // pred_check
      _
    $region35: #{graph_gsn_forward.1} parent=1 // pred_check_branch
      %54 = sbr.rel (0) target = $region37
    $region36: #{graph_gsn_forward.1} parent=1 // pred_region
      %55 = dma.done [#allocation5], 3072
    $region37: #{graph_gsn_forward.1} parent=1 // pred_fallthru
      _
    %v57 = vld [vmem:[%s0] sm:$0xf]
    %v58 = vld [vmem:[%s0 + $0x4] sm:$0xf]
    %v59 = vld [vmem:[%s2] sm:$0xff]
    %v60 = vld [vmem:[%s1] sm:$0xf]
    %v61 = vld [vmem:[%s1 + $0x4] sm:$0xf]
    %v64 = vunpack.c.l.b16 %v57
    %v65 = vunpack.c.l.b16 %v58
    %v66 = vpack.c.b16 %v65, %v64
    %v69 = vunpack.c.l.b16 %v60
    %v70 = vunpack.c.l.b16 %v61
    %v71 = vpack.c.b16 %v70, %v69
    %vm73 = vcmask 130048
    %v75 = vsel %vm73, %v66, 0
    %77 = vmatprep.subr.bf16.mxu0 0
    %78 = vmatpush1.bf16.msra.mxu0 %v71
    %79 = vmatprep.subr.bf16.mxu0 0
    %80 = vmatpush1.bf16.msra.mxu0 0
    %81 = vmatprep.subr.bf16.mxu0 0
    %82 = vmatpush1.bf16.msra.mxu0 0
    %83 = vmatprep.subr.bf16.mxu0 0
    %84 = vmatpush1.bf16.msra.mxu0 0
    %85 = vmatprep.subr.bf16.mxu0 0
    %86 = vmatpush1.bf16.msra.mxu0 0
    %87 = vmatprep.subr.bf16.mxu0 0
    %88 = vmatpush1.bf16.msra.mxu0 0
    %89 = vmatprep.subr.bf16.mxu0 0
    %90 = vmatpush1.bf16.msra.mxu0 0
    %91 = vmatprep.subr.bf16.mxu0 0
    %92 = vmatpush1.bf16.msra.mxu0 0
    %93 = vmatprep.subr.bf16.mxu0 0
    %94 = vmatpush1.bf16.msra.mxu0 0
    %95 = vmatprep.subr.bf16.mxu0 0
    %96 = vmatpush1.bf16.msra.mxu0 0
    %97 = vmatprep.subr.bf16.mxu0 0
    %98 = vmatpush1.bf16.msra.mxu0 0
    %99 = vmatprep.subr.bf16.mxu0 0
    %100 = vmatpush1.bf16.msra.mxu0 0
    %101 = vmatprep.subr.bf16.mxu0 0
    %102 = vmatpush1.bf16.msra.mxu0 0
    %103 = vmatprep.subr.bf16.mxu0 0
    %104 = vmatpush1.bf16.msra.mxu0 0
    %105 = vmatprep.subr.bf16.mxu0 0
    %106 = vmatpush1.bf16.msra.mxu0 0
    %107 = vmatprep.subr.bf16.mxu0 0
    %108 = vmatpush1.bf16.msra.mxu0 0
    %109 = vmatprep.mubr.bf16.mxu0 0
    %110 = vmatmul.mubr.bf16.gmra.mrb[0].mxu0 %v75
    %v111 = vpop.f32.mrb[0].mxu0
    %v112 = vadd.f32 0.0, %v111
    %v113 = vpop.f32.mrb[0].mxu0
    %v114 = vpop.f32.mrb[0].mxu0
    %v115 = vadd.f32 0.0, %v114
    %v116 = vpop.f32.mrb[0].mxu0
    %117 = vdwg.mxu0
    %v118 = vpack.c.bf16 %v115, %v112
    %v119 = vld [vmem:[%s6] sm:$0xf]
    %v120 = vld [vmem:[%s3] sm:$0xf]
    %v121 = vlaneseq
    %v122 = vshrl.u32 %v121, 7
    %v123 = vsub.s32 0, %v122
    %v124 = vrot.slane %v119, %v123
    %vm125 = vcmask 64512
    %v127 = vsel %vm125, %v118, 0
    %vm129 = vcmask 1043456
    %v131 = vsel %vm129, %v120, 0
    %133 = vmatprep.subr.bf16.mxu0 0
    %134 = vmatpush1.bf16.msra.mxu0 %v131
    %135 = vmatprep.subr.bf16.mxu0 0
    %136 = vmatpush1.bf16.msra.mxu0 0
    %137 = vmatprep.subr.bf16.mxu0 0
    %138 = vmatpush1.bf16.msra.mxu0 0
    %139 = vmatprep.subr.bf16.mxu0 0
    %140 = vmatpush1.bf16.msra.mxu0 0
    %141 = vmatprep.subr.bf16.mxu0 0
    %142 = vmatpush1.bf16.msra.mxu0 0
    %143 = vmatprep.subr.bf16.mxu0 0
    %144 = vmatpush1.bf16.msra.mxu0 0
    %145 = vmatprep.subr.bf16.mxu0 0
    %146 = vmatpush1.bf16.msra.mxu0 0
    %147 = vmatprep.subr.bf16.mxu0 0
    %148 = vmatpush1.bf16.msra.mxu0 0
    %149 = vmatprep.subr.bf16.mxu0 0
    %150 = vmatpush1.bf16.msra.mxu0 0
    %151 = vmatprep.subr.bf16.mxu0 0
    %152 = vmatpush1.bf16.msra.mxu0 0
    %153 = vmatprep.subr.bf16.mxu0 0
    %154 = vmatpush1.bf16.msra.mxu0 0
    %155 = vmatprep.subr.bf16.mxu0 0
    %156 = vmatpush1.bf16.msra.mxu0 0
    %157 = vmatprep.subr.bf16.mxu0 0
    %158 = vmatpush1.bf16.msra.mxu0 0
    %159 = vmatprep.subr.bf16.mxu0 0
    %160 = vmatpush1.bf16.msra.mxu0 0
    %161 = vmatprep.subr.bf16.mxu0 0
    %162 = vmatpush1.bf16.msra.mxu0 0
    %163 = vmatprep.subr.bf16.mxu0 0
    %164 = vmatpush1.bf16.msra.mxu0 0
    %165 = vmatprep.mubr.bf16.mxu0 0
    %166 = vmatmul.mubr.bf16.gmra.mrb[0].mxu0 %v127
    %v167 = vpop.f32.mrb[0].mxu0
    %v168 = vadd.f32 %v124, %v167
    %v169 = vpop.f32.mrb[0].mxu0
    %v170 = vpop.f32.mrb[0].mxu0
    %v171 = vadd.f32 %v124, %v170
    %v172 = vpop.f32.mrb[0].mxu0
    %173 = vdwg.mxu0
    %v174 = vmax.f32 %v168, 0.0
    %v175 = vmax.f32 %v171, 0.0
    %v176 = vpack.c.bf16 %v175, %v174
    %v177 = vld [vmem:[#allocation4] sm:$0xf]
    %v178 = vld [vmem:[#allocation4 + $0x4] sm:$0xf]
    %v179 = vld [vmem:[#allocation4 + $0x8] sm:$0xf]
    %v180 = vld [vmem:[#allocation4 + $0xc] sm:$0xf]
    %v181 = vld [vmem:[#allocation4 + $0x10] sm:$0xf]
    %v182 = vld [vmem:[#allocation4 + $0x14] sm:$0xf]
    %v183 = vld [vmem:[#allocation4 + $0x18] sm:$0xf]
    %v184 = vld [vmem:[#allocation4 + $0x1c] sm:$0xf]
    %v185 = vld [vmem:[#allocation4 + $0x20] sm:$0xf]
    %v186 = vld [vmem:[#allocation4 + $0x24] sm:$0xf]
    %v187 = vld [vmem:[#allocation4 + $0x28] sm:$0xf]
    %v188 = vld [vmem:[#allocation4 + $0x2c] sm:$0xf]
    %v189 = vld [vmem:[#allocation4 + $0x30] sm:$0xf]
    %v190 = vld [vmem:[#allocation4 + $0x34] sm:$0xf]
    %v191 = vld [vmem:[#allocation4 + $0x38] sm:$0xf]
    %v192 = vld [vmem:[#allocation4 + $0x3c] sm:$0xf]
    %v193 = vlaneseq
    %v194 = vshrl.u32 %v193, 7
    %v195 = vsub.s32 1, %v194
    %v196 = vrot.slane %v119, %v195
    %v213 = vunpack.c.l.b16 %v177
    %v214 = vunpack.c.l.b16 %v178
    %v215 = vunpack.c.l.b16 %v179
    %v216 = vunpack.c.l.b16 %v180
    %v217 = vunpack.c.l.b16 %v181
    %v218 = vunpack.c.l.b16 %v182
    %v219 = vunpack.c.l.b16 %v183
    %v220 = vunpack.c.l.b16 %v184
    %v221 = vunpack.c.l.b16 %v185
    %v222 = vunpack.c.l.b16 %v186
    %v223 = vunpack.c.l.b16 %v187
    %v224 = vunpack.c.l.b16 %v188
    %v225 = vunpack.c.l.b16 %v189
    %v226 = vunpack.c.l.b16 %v190
    %v227 = vunpack.c.l.b16 %v191
    %v228 = vunpack.c.l.b16 %v192
    %v229 = vpack.c.b16 %v214, %v213
    %v230 = vpack.c.b16 %v216, %v215
    %v231 = vpack.c.b16 %v218, %v217
    %v232 = vpack.c.b16 %v220, %v219
    %v233 = vpack.c.b16 %v222, %v221
    %v234 = vpack.c.b16 %v224, %v223
    %v235 = vpack.c.b16 %v226, %v225
    %v236 = vpack.c.b16 %v228, %v227
    %245 = vmatprep.subr.bf16.mxu0 0
    %246 = vmatpush1.bf16.msra.mxu0 %v229
    %247 = vmatprep.subr.bf16.mxu0 0
    %248 = vmatpush1.bf16.msra.mxu0 %v230
    %249 = vmatprep.subr.bf16.mxu0 0
    %250 = vmatpush1.bf16.msra.mxu0 %v231
    %251 = vmatprep.subr.bf16.mxu0 0
    %252 = vmatpush1.bf16.msra.mxu0 %v232
    %253 = vmatprep.subr.bf16.mxu0 0
    %254 = vmatpush1.bf16.msra.mxu0 %v233
    %255 = vmatprep.subr.bf16.mxu0 0
    %256 = vmatpush1.bf16.msra.mxu0 %v234
    %257 = vmatprep.subr.bf16.mxu0 0
    %258 = vmatpush1.bf16.msra.mxu0 %v235
    %259 = vmatprep.subr.bf16.mxu0 0
    %260 = vmatpush1.bf16.msra.mxu0 %v236
    %261 = vmatprep.subr.bf16.mxu0 0
    %262 = vmatpush1.bf16.msra.mxu0 0
    %263 = vmatprep.subr.bf16.mxu0 0
    %264 = vmatpush1.bf16.msra.mxu0 0
    %265 = vmatprep.subr.bf16.mxu0 0
    %266 = vmatpush1.bf16.msra.mxu0 0
    %267 = vmatprep.subr.bf16.mxu0 0
    %268 = vmatpush1.bf16.msra.mxu0 0
    %269 = vmatprep.subr.bf16.mxu0 0
    %270 = vmatpush1.bf16.msra.mxu0 0
    %271 = vmatprep.subr.bf16.mxu0 0
    %272 = vmatpush1.bf16.msra.mxu0 0
    %273 = vmatprep.subr.bf16.mxu0 0
    %274 = vmatpush1.bf16.msra.mxu0 0
    %275 = vmatprep.subr.bf16.mxu0 0
    %276 = vmatpush1.bf16.msra.mxu0 0
    %277 = vmatprep.mubr.bf16.mxu0 0
    %278 = vmatmul.mubr.bf16.gmra.mrb[0].mxu0 %v176
    %v279 = vpop.f32.mrb[0].mxu0
    %v280 = vadd.f32 %v196, %v279
    %v281 = vpop.f32.mrb[0].mxu0
    %v282 = vpop.f32.mrb[0].mxu0
    %v283 = vadd.f32 %v196, %v282
    %v284 = vpop.f32.mrb[0].mxu0
    %285 = vdwg.mxu0
    %v286 = vadd.f32 %v280, %v283
    %v287 = vrot.slane %v286, 4
    %v288 = vadd.f32 %v286, %v287
    %v289 = vrot.slane %v288, 2
    %v290 = vadd.f32 %v288, %v289
    %v291 = vrot.slane %v290, 1
    %v292 = vadd.f32 %v290, %v291
    %v293 = vrcp.pop 16.0
    %v294 = vmul.f32 %v292, %v293
    %v295 = vsub.f32 %v280, %v294
    %v296 = vsub.f32 %v283, %v294
    %v297 = vmul.f32 %v295, %v295
    %v298 = vmul.f32 %v296, %v296
    %v299 = vadd.f32 %v297, %v298
    %v300 = vrot.slane %v299, 4
    %v301 = vadd.f32 %v299, %v300
    %v302 = vrot.slane %v301, 2
    %v303 = vadd.f32 %v301, %v302
    %v304 = vrot.slane %v303, 1
    %v305 = vadd.f32 %v303, %v304
    %v306 = vmul.f32 %v305, %v293
    %v307 = vadd.f32 %v306, 1e-05
    %v308 = vrsqrt.pop %v307
    %v309 = vmul.f32 %v295, %v308
    %v310 = vmul.f32 %v296, %v308
    %v311 = vlaneseq
    %v312 = vshrl.u32 %v311, 7
    %v313 = vsub.s32 2, %v312
    %v314 = vrot.slane %v119, %v313
    %v315 = vmul.f32 %v309, %v314
    %v316 = vmul.f32 %v310, %v314
    %v317 = vlaneseq
    %v318 = vshrl.u32 %v317, 7
    %v319 = vsub.s32 3, %v318
    %v320 = vrot.slane %v119, %v319
    %v321 = vadd.f32 %v315, %v320
    %v322 = vadd.f32 %v316, %v320
    %v323 = vmax.f32 %v321, 0.0
    %v324 = vmax.f32 %v322, 0.0
    %v325 = vpack.c.bf16 %v324, %v323
    %326 = vst [vmem:[%s7] sm:$0xff] %v323
    %327 = vst [vmem:[%s7 + $0x18] sm:$0xff] %v324
    %v329 = vsel %vm73, %v59, 0
    %331 = vmatprep.subr.mxu0 0.0
    %332 = vmatpush1.msra.mxu0 %v323
    %333 = vmatprep.subr.mxu0 0.0
    %334 = vmatpush1.msra.mxu0 %v324
    %335 = vmatprep.subr.mxu0 0.0
    %336 = vmatpush1.msra.mxu0 0.0
    %337 = vmatprep.subr.mxu0 0.0
    %338 = vmatpush1.msra.mxu0 0.0
    %339 = vmatprep.subr.mxu0 0.0
    %340 = vmatpush1.msra.mxu0 0.0
    %341 = vmatprep.subr.mxu0 0.0
    %342 = vmatpush1.msra.mxu0 0.0
    %343 = vmatprep.subr.mxu0 0.0
    %344 = vmatpush1.msra.mxu0 0.0
    %345 = vmatprep.subr.mxu0 0.0
    %346 = vmatpush1.msra.mxu0 0.0
    %347 = vmatprep.subr.mxu0 0.0
    %348 = vmatpush1.msra.mxu0 0.0
    %349 = vmatprep.subr.mxu0 0.0
    %350 = vmatpush1.msra.mxu0 0.0
    %351 = vmatprep.subr.mxu0 0.0
    %352 = vmatpush1.msra.mxu0 0.0
    %353 = vmatprep.subr.mxu0 0.0
    %354 = vmatpush1.msra.mxu0 0.0
    %355 = vmatprep.subr.mxu0 0.0
    %356 = vmatpush1.msra.mxu0 0.0
    %357 = vmatprep.subr.mxu0 0.0
    %358 = vmatpush1.msra.mxu0 0.0
    %359 = vmatprep.subr.mxu0 0.0
    %360 = vmatpush1.msra.mxu0 0.0
    %361 = vmatprep.subr.mxu0 0.0
    %362 = vmatpush1.msra.mxu0 0.0
    %363 = vmatprep.subr.mxu0 0.0
    %364 = vmatpush1.msra.mxu0 0.0
    %365 = vmatprep.subr.mxu0 0.0
    %366 = vmatpush1.msra.mxu0 0.0
    %367 = vmatprep.subr.mxu0 0.0
    %368 = vmatpush1.msra.mxu0 0.0
    %369 = vmatprep.subr.mxu0 0.0
    %370 = vmatpush1.msra.mxu0 0.0
    %371 = vmatprep.subr.mxu0 0.0
    %372 = vmatpush1.msra.mxu0 0.0
    %373 = vmatprep.subr.mxu0 0.0
    %374 = vmatpush1.msra.mxu0 0.0
    %375 = vmatprep.subr.mxu0 0.0
    %376 = vmatpush1.msra.mxu0 0.0
    %377 = vmatprep.subr.mxu0 0.0
    %378 = vmatpush1.msra.mxu0 0.0
    %379 = vmatprep.subr.mxu0 0.0
    %380 = vmatpush1.msra.mxu0 0.0
    %381 = vmatprep.subr.mxu0 0.0
    %382 = vmatpush1.msra.mxu0 0.0
    %383 = vmatprep.subr.mxu0 0.0
    %384 = vmatpush1.msra.mxu0 0.0
    %385 = vmatprep.subr.mxu0 0.0
    %386 = vmatpush1.msra.mxu0 0.0
    %387 = vmatprep.subr.mxu0 0.0
    %388 = vmatpush1.msra.mxu0 0.0
    %389 = vmatprep.subr.mxu0 0.0
    %390 = vmatpush1.msra.mxu0 0.0
    %391 = vmatprep.subr.mxu0 0.0
    %392 = vmatpush1.msra.mxu0 0.0
    %393 = vmatprep.subr.mxu0 0.0
    %394 = vmatpush1.msra.mxu0 0.0
    %395 = vmatprep.mubr.f32.mxu0 0.0
    %396 = vmatmul.mubr.f32.gmra.mrb[0].mxu0 %v329
    %v397 = vpop.f32.mrb[0].mxu0
    %v398 = vadd.f32 0.0, %v397
    %v399 = vpop.f32.mrb[0].mxu0
    %400 = vdwg.mxu0
    %401 = vst [vmem:[%s8] sm:$0xff] %v398
    %s402 = scalar_lea.vmem %s6, 4
    %v403 = vld [vmem:[%s402] sm:$0xf]
    %s404 = scalar_lea.vmem %s3, 4
    %v405 = vld [vmem:[%s404] sm:$0xf]
    %406 = vmatprep.subr.bf16.mxu0 0
    %407 = vmatpush1.bf16.msra.mxu0 %v325
    %408 = vmatprep.subr.bf16.mxu0 0
    %409 = vmatpush1.bf16.msra.mxu0 0
    %410 = vmatprep.subr.bf16.mxu0 0
    %411 = vmatpush1.bf16.msra.mxu0 0
    %412 = vmatprep.subr.bf16.mxu0 0
    %413 = vmatpush1.bf16.msra.mxu0 0
    %414 = vmatprep.subr.bf16.mxu0 0
    %415 = vmatpush1.bf16.msra.mxu0 0
    %416 = vmatprep.subr.bf16.mxu0 0
    %417 = vmatpush1.bf16.msra.mxu0 0
    %418 = vmatprep.subr.bf16.mxu0 0
    %419 = vmatpush1.bf16.msra.mxu0 0
    %420 = vmatprep.subr.bf16.mxu0 0
    %421 = vmatpush1.bf16.msra.mxu0 0
    %422 = vmatprep.subr.bf16.mxu0 0
    %423 = vmatpush1.bf16.msra.mxu0 0
    %424 = vmatprep.subr.bf16.mxu0 0
    %425 = vmatpush1.bf16.msra.mxu0 0
    %426 = vmatprep.subr.bf16.mxu0 0
    %427 = vmatpush1.bf16.msra.mxu0 0
    %428 = vmatprep.subr.bf16.mxu0 0
    %429 = vmatpush1.bf16.msra.mxu0 0
    %430 = vmatprep.subr.bf16.mxu0 0
    %431 = vmatpush1.bf16.msra.mxu0 0
    %432 = vmatprep.subr.bf16.mxu0 0
    %433 = vmatpush1.bf16.msra.mxu0 0
    %434 = vmatprep.subr.bf16.mxu0 0
    %435 = vmatpush1.bf16.msra.mxu0 0
    %436 = vmatprep.subr.bf16.mxu0 0
    %437 = vmatpush1.bf16.msra.mxu0 0
    %438 = vmatprep.mubr.bf16.mxu0 0
    %439 = vmatmul.mubr.bf16.gmra.mrb[0].mxu0 %v75
    %v440 = vpop.f32.mrb[0].mxu0
    %v441 = vadd.f32 0.0, %v440
    %v442 = vpop.f32.mrb[0].mxu0
    %v443 = vpop.f32.mrb[0].mxu0
    %v444 = vadd.f32 0.0, %v443
    %v445 = vpop.f32.mrb[0].mxu0
    %446 = vdwg.mxu0
    %v447 = vpack.c.bf16 %v444, %v441
    %v448 = vld [vmem:[#allocation2] sm:$0xf]
    %v449 = vld [vmem:[#allocation2 + $0x4] sm:$0xf]
    %v450 = vld [vmem:[#allocation2 + $0x8] sm:$0xf]
    %v451 = vld [vmem:[#allocation2 + $0xc] sm:$0xf]
    %v452 = vld [vmem:[#allocation2 + $0x10] sm:$0xf]
    %v453 = vld [vmem:[#allocation2 + $0x14] sm:$0xf]
    %v454 = vld [vmem:[#allocation2 + $0x18] sm:$0xf]
    %v455 = vld [vmem:[#allocation2 + $0x1c] sm:$0xf]
    %v456 = vld [vmem:[#allocation2 + $0x20] sm:$0xf]
    %v457 = vld [vmem:[#allocation2 + $0x24] sm:$0xf]
    %v458 = vld [vmem:[#allocation2 + $0x28] sm:$0xf]
    %v459 = vld [vmem:[#allocation2 + $0x2c] sm:$0xf]
    %v460 = vld [vmem:[#allocation2 + $0x30] sm:$0xf]
    %v461 = vld [vmem:[#allocation2 + $0x34] sm:$0xf]
    %v462 = vld [vmem:[#allocation2 + $0x38] sm:$0xf]
    %v463 = vld [vmem:[#allocation2 + $0x3c] sm:$0xf]
    %v480 = vunpack.c.l.b16 %v448
    %v481 = vunpack.c.l.b16 %v449
    %v482 = vunpack.c.l.b16 %v450
    %v483 = vunpack.c.l.b16 %v451
    %v484 = vunpack.c.l.b16 %v452
    %v485 = vunpack.c.l.b16 %v453
    %v486 = vunpack.c.l.b16 %v454
    %v487 = vunpack.c.l.b16 %v455
    %v488 = vunpack.c.l.b16 %v456
    %v489 = vunpack.c.l.b16 %v457
    %v490 = vunpack.c.l.b16 %v458
    %v491 = vunpack.c.l.b16 %v459
    %v492 = vunpack.c.l.b16 %v460
    %v493 = vunpack.c.l.b16 %v461
    %v494 = vunpack.c.l.b16 %v462
    %v495 = vunpack.c.l.b16 %v463
    %v496 = vpack.c.b16 %v481, %v480
    %v497 = vpack.c.b16 %v483, %v482
    %v498 = vpack.c.b16 %v485, %v484
    %v499 = vpack.c.b16 %v487, %v486
    %v500 = vpack.c.b16 %v489, %v488
    %v501 = vpack.c.b16 %v491, %v490
    %v502 = vpack.c.b16 %v493, %v492
    %v503 = vpack.c.b16 %v495, %v494
    %512 = vmatprep.subr.bf16.mxu0 0
    %513 = vmatpush1.bf16.msra.mxu0 %v496
    %514 = vmatprep.subr.bf16.mxu0 0
    %515 = vmatpush1.bf16.msra.mxu0 %v497
    %516 = vmatprep.subr.bf16.mxu0 0
    %517 = vmatpush1.bf16.msra.mxu0 %v498
    %518 = vmatprep.subr.bf16.mxu0 0
    %519 = vmatpush1.bf16.msra.mxu0 %v499
    %520 = vmatprep.subr.bf16.mxu0 0
    %521 = vmatpush1.bf16.msra.mxu0 %v500
    %522 = vmatprep.subr.bf16.mxu0 0
    %523 = vmatpush1.bf16.msra.mxu0 %v501
    %524 = vmatprep.subr.bf16.mxu0 0
    %525 = vmatpush1.bf16.msra.mxu0 %v502
    %526 = vmatprep.subr.bf16.mxu0 0
    %527 = vmatpush1.bf16.msra.mxu0 %v503
    %528 = vmatprep.subr.bf16.mxu0 0
    %529 = vmatpush1.bf16.msra.mxu0 0
    %530 = vmatprep.subr.bf16.mxu0 0
    %531 = vmatpush1.bf16.msra.mxu0 0
    %532 = vmatprep.subr.bf16.mxu0 0
    %533 = vmatpush1.bf16.msra.mxu0 0
    %534 = vmatprep.subr.bf16.mxu0 0
    %535 = vmatpush1.bf16.msra.mxu0 0
    %536 = vmatprep.subr.bf16.mxu0 0
    %537 = vmatpush1.bf16.msra.mxu0 0
    %538 = vmatprep.subr.bf16.mxu0 0
    %539 = vmatpush1.bf16.msra.mxu0 0
    %540 = vmatprep.subr.bf16.mxu0 0
    %541 = vmatpush1.bf16.msra.mxu0 0
    %542 = vmatprep.subr.bf16.mxu0 0
    %543 = vmatpush1.bf16.msra.mxu0 0
    %544 = vmatprep.mubr.bf16.mxu0 0
    %545 = vmatmul.mubr.bf16.gmra.mrb[0].mxu0 %v447
    %v546 = vpop.f32.mrb[0].mxu0
    %v547 = vadd.f32 0.0, %v546
    %v548 = vpop.f32.mrb[0].mxu0
    %v549 = vpop.f32.mrb[0].mxu0
    %v550 = vadd.f32 0.0, %v549
    %v551 = vpop.f32.mrb[0].mxu0
    %552 = vdwg.mxu0
    %v554 = vsel %vm129, %v405, 0
    %556 = vmatprep.subr.bf16.mxu0 0
    %557 = vmatpush1.bf16.msra.mxu0 %v554
    %558 = vmatprep.subr.bf16.mxu0 0
    %559 = vmatpush1.bf16.msra.mxu0 0
    %560 = vmatprep.subr.bf16.mxu0 0
    %561 = vmatpush1.bf16.msra.mxu0 0
    %562 = vmatprep.subr.bf16.mxu0 0
    %563 = vmatpush1.bf16.msra.mxu0 0
    %564 = vmatprep.subr.bf16.mxu0 0
    %565 = vmatpush1.bf16.msra.mxu0 0
    %566 = vmatprep.subr.bf16.mxu0 0
    %567 = vmatpush1.bf16.msra.mxu0 0
    %568 = vmatprep.subr.bf16.mxu0 0
    %569 = vmatpush1.bf16.msra.mxu0 0
    %570 = vmatprep.subr.bf16.mxu0 0
    %571 = vmatpush1.bf16.msra.mxu0 0
    %572 = vmatprep.subr.bf16.mxu0 0
    %573 = vmatpush1.bf16.msra.mxu0 0
    %574 = vmatprep.subr.bf16.mxu0 0
    %575 = vmatpush1.bf16.msra.mxu0 0
    %576 = vmatprep.subr.bf16.mxu0 0
    %577 = vmatpush1.bf16.msra.mxu0 0
    %578 = vmatprep.subr.bf16.mxu0 0
    %579 = vmatpush1.bf16.msra.mxu0 0
    %580 = vmatprep.subr.bf16.mxu0 0
    %581 = vmatpush1.bf16.msra.mxu0 0
    %582 = vmatprep.subr.bf16.mxu0 0
    %583 = vmatpush1.bf16.msra.mxu0 0
    %584 = vmatprep.subr.bf16.mxu0 0
    %585 = vmatpush1.bf16.msra.mxu0 0
    %586 = vmatprep.subr.bf16.mxu0 0
    %587 = vmatpush1.bf16.msra.mxu0 0
    %588 = vmatprep.mubr.bf16.mxu0 0
    %589 = vmatmul.mubr.bf16.gmra.mrb[0].mxu0 %v127
    %v590 = vpop.f32.mrb[0].mxu0
    %v591 = vadd.f32 %v547, %v590
    %v592 = vpop.f32.mrb[0].mxu0
    %v593 = vpop.f32.mrb[0].mxu0
    %v594 = vadd.f32 %v550, %v593
    %v595 = vpop.f32.mrb[0].mxu0
    %596 = vdwg.mxu0
    %v597 = vlaneseq
    %v598 = vshrl.u32 %v597, 7
    %v599 = vsub.s32 0, %v598
    %v600 = vrot.slane %v403, %v599
    %v601 = vadd.f32 %v591, %v600
    %v602 = vadd.f32 %v594, %v600
    %v603 = vmax.f32 %v601, 0.0
    %v604 = vmax.f32 %v602, 0.0
    %v605 = vpack.c.bf16 %v604, %v603
    %s606 = scalar_lea.vmem [#allocation4], 64
    %v607 = vld [vmem:[%s606] sm:$0xf]
    %v608 = vld [vmem:[%s606 + $0x4] sm:$0xf]
    %v609 = vld [vmem:[%s606 + $0x8] sm:$0xf]
    %v610 = vld [vmem:[%s606 + $0xc] sm:$0xf]
    %v611 = vld [vmem:[%s606 + $0x10] sm:$0xf]
    %v612 = vld [vmem:[%s606 + $0x14] sm:$0xf]
    %v613 = vld [vmem:[%s606 + $0x18] sm:$0xf]
    %v614 = vld [vmem:[%s606 + $0x1c] sm:$0xf]
    %v615 = vld [vmem:[%s606 + $0x20] sm:$0xf]
    %v616 = vld [vmem:[%s606 + $0x24] sm:$0xf]
    %v617 = vld [vmem:[%s606 + $0x28] sm:$0xf]
    %v618 = vld [vmem:[%s606 + $0x2c] sm:$0xf]
    %v619 = vld [vmem:[%s606 + $0x30] sm:$0xf]
    %v620 = vld [vmem:[%s606 + $0x34] sm:$0xf]
    %v621 = vld [vmem:[%s606 + $0x38] sm:$0xf]
    %v622 = vld [vmem:[%s606 + $0x3c] sm:$0xf]
    %v623 = vlaneseq
    %v624 = vshrl.u32 %v623, 7
    %v625 = vsub.s32 1, %v624
    %v626 = vrot.slane %v403, %v625
    %v643 = vunpack.c.l.b16 %v607
    %v644 = vunpack.c.l.b16 %v608
    %v645 = vunpack.c.l.b16 %v609
    %v646 = vunpack.c.l.b16 %v610
    %v647 = vunpack.c.l.b16 %v611
    %v648 = vunpack.c.l.b16 %v612
    %v649 = vunpack.c.l.b16 %v613
    %v650 = vunpack.c.l.b16 %v614
    %v651 = vunpack.c.l.b16 %v615
    %v652 = vunpack.c.l.b16 %v616
    %v653 = vunpack.c.l.b16 %v617
    %v654 = vunpack.c.l.b16 %v618
    %v655 = vunpack.c.l.b16 %v619
    %v656 = vunpack.c.l.b16 %v620
    %v657 = vunpack.c.l.b16 %v621
    %v658 = vunpack.c.l.b16 %v622
    %v659 = vpack.c.b16 %v644, %v643
    %v660 = vpack.c.b16 %v646, %v645
    %v661 = vpack.c.b16 %v648, %v647
    %v662 = vpack.c.b16 %v650, %v649
    %v663 = vpack.c.b16 %v652, %v651
    %v664 = vpack.c.b16 %v654, %v653
    %v665 = vpack.c.b16 %v656, %v655
    %v666 = vpack.c.b16 %v658, %v657
    %675 = vmatprep.subr.bf16.mxu0 0
    %676 = vmatpush1.bf16.msra.mxu0 %v659
    %677 = vmatprep.subr.bf16.mxu0 0
    %678 = vmatpush1.bf16.msra.mxu0 %v660
    %679 = vmatprep.subr.bf16.mxu0 0
    %680 = vmatpush1.bf16.msra.mxu0 %v661
    %681 = vmatprep.subr.bf16.mxu0 0
    %682 = vmatpush1.bf16.msra.mxu0 %v662
    %683 = vmatprep.subr.bf16.mxu0 0
    %684 = vmatpush1.bf16.msra.mxu0 %v663
    %685 = vmatprep.subr.bf16.mxu0 0
    %686 = vmatpush1.bf16.msra.mxu0 %v664
    %687 = vmatprep.subr.bf16.mxu0 0
    %688 = vmatpush1.bf16.msra.mxu0 %v665
    %689 = vmatprep.subr.bf16.mxu0 0
    %690 = vmatpush1.bf16.msra.mxu0 %v666
    %691 = vmatprep.subr.bf16.mxu0 0
    %692 = vmatpush1.bf16.msra.mxu0 0
    %693 = vmatprep.subr.bf16.mxu0 0
    %694 = vmatpush1.bf16.msra.mxu0 0
    %695 = vmatprep.subr.bf16.mxu0 0
    %696 = vmatpush1.bf16.msra.mxu0 0
    %697 = vmatprep.subr.bf16.mxu0 0
    %698 = vmatpush1.bf16.msra.mxu0 0
    %699 = vmatprep.subr.bf16.mxu0 0
    %700 = vmatpush1.bf16.msra.mxu0 0
    %701 = vmatprep.subr.bf16.mxu0 0
    %702 = vmatpush1.bf16.msra.mxu0 0
    %703 = vmatprep.subr.bf16.mxu0 0
    %704 = vmatpush1.bf16.msra.mxu0 0
    %705 = vmatprep.subr.bf16.mxu0 0
    %706 = vmatpush1.bf16.msra.mxu0 0
    %707 = vmatprep.mubr.bf16.mxu0 0
    %708 = vmatmul.mubr.bf16.gmra.mrb[0].mxu0 %v605
    %v709 = vpop.f32.mrb[0].mxu0
    %v710 = vadd.f32 %v626, %v709
    %v711 = vpop.f32.mrb[0].mxu0
    %v712 = vpop.f32.mrb[0].mxu0
    %v713 = vadd.f32 %v626, %v712
    %v714 = vpop.f32.mrb[0].mxu0
    %715 = vdwg.mxu0
    %v716 = vadd.f32 %v710, %v713
    %v717 = vrot.slane %v716, 4
    %v718 = vadd.f32 %v716, %v717
    %v719 = vrot.slane %v718, 2
    %v720 = vadd.f32 %v718, %v719
    %v721 = vrot.slane %v720, 1
    %v722 = vadd.f32 %v720, %v721
    %v723 = vmul.f32 %v722, %v293
    %v724 = vsub.f32 %v710, %v723
    %v725 = vsub.f32 %v713, %v723
    %v726 = vmul.f32 %v724, %v724
    %v727 = vmul.f32 %v725, %v725
    %v728 = vadd.f32 %v726, %v727
    %v729 = vrot.slane %v728, 4
    %v730 = vadd.f32 %v728, %v729
    %v731 = vrot.slane %v730, 2
    %v732 = vadd.f32 %v730, %v731
    %v733 = vrot.slane %v732, 1
    %v734 = vadd.f32 %v732, %v733
    %v735 = vmul.f32 %v734, %v293
    %v736 = vadd.f32 %v735, 1e-05
    %v737 = vrsqrt.pop %v736
    %v738 = vmul.f32 %v724, %v737
    %v739 = vmul.f32 %v725, %v737
    %v740 = vlaneseq
    %v741 = vshrl.u32 %v740, 7
    %v742 = vsub.s32 2, %v741
    %v743 = vrot.slane %v403, %v742
    %v744 = vmul.f32 %v738, %v743
    %v745 = vmul.f32 %v739, %v743
    %v746 = vlaneseq
    %v747 = vshrl.u32 %v746, 7
    %v748 = vsub.s32 3, %v747
    %v749 = vrot.slane %v403, %v748
    %v750 = vadd.f32 %v744, %v749
    %v751 = vadd.f32 %v745, %v749
    %v752 = vmax.f32 %v750, 0.0
    %v753 = vmax.f32 %v751, 0.0
    %v754 = vpack.c.bf16 %v753, %v752
    %755 = vst [vmem:[%s7 + $0x8] sm:$0xff] %v752
    %756 = vst [vmem:[%s7 + $0x20] sm:$0xff] %v753
    %757 = vmatprep.subr.mxu0 0.0
    %758 = vmatpush1.msra.mxu0 %v752
    %759 = vmatprep.subr.mxu0 0.0
    %760 = vmatpush1.msra.mxu0 %v753
    %761 = vmatprep.subr.mxu0 0.0
    %762 = vmatpush1.msra.mxu0 0.0
    %763 = vmatprep.subr.mxu0 0.0
    %764 = vmatpush1.msra.mxu0 0.0
    %765 = vmatprep.subr.mxu0 0.0
    %766 = vmatpush1.msra.mxu0 0.0
    %767 = vmatprep.subr.mxu0 0.0
    %768 = vmatpush1.msra.mxu0 0.0
    %769 = vmatprep.subr.mxu0 0.0
    %770 = vmatpush1.msra.mxu0 0.0
    %771 = vmatprep.subr.mxu0 0.0
    %772 = vmatpush1.msra.mxu0 0.0
    %773 = vmatprep.subr.mxu0 0.0
    %774 = vmatpush1.msra.mxu0 0.0
    %775 = vmatprep.subr.mxu0 0.0
    %776 = vmatpush1.msra.mxu0 0.0
    %777 = vmatprep.subr.mxu0 0.0
    %778 = vmatpush1.msra.mxu0 0.0
    %779 = vmatprep.subr.mxu0 0.0
    %780 = vmatpush1.msra.mxu0 0.0
    %781 = vmatprep.subr.mxu0 0.0
    %782 = vmatpush1.msra.mxu0 0.0
    %783 = vmatprep.subr.mxu0 0.0
    %784 = vmatpush1.msra.mxu0 0.0
    %785 = vmatprep.subr.mxu0 0.0
    %786 = vmatpush1.msra.mxu0 0.0
    %787 = vmatprep.subr.mxu0 0.0
    %788 = vmatpush1.msra.mxu0 0.0
    %789 = vmatprep.subr.mxu0 0.0
    %790 = vmatpush1.msra.mxu0 0.0
    %791 = vmatprep.subr.mxu0 0.0
    %792 = vmatpush1.msra.mxu0 0.0
    %793 = vmatprep.subr.mxu0 0.0
    %794 = vmatpush1.msra.mxu0 0.0
    %795 = vmatprep.subr.mxu0 0.0
    %796 = vmatpush1.msra.mxu0 0.0
    %797 = vmatprep.subr.mxu0 0.0
    %798 = vmatpush1.msra.mxu0 0.0
    %799 = vmatprep.subr.mxu0 0.0
    %800 = vmatpush1.msra.mxu0 0.0
    %801 = vmatprep.subr.mxu0 0.0
    %802 = vmatpush1.msra.mxu0 0.0
    %803 = vmatprep.subr.mxu0 0.0
    %804 = vmatpush1.msra.mxu0 0.0
    %805 = vmatprep.subr.mxu0 0.0
    %806 = vmatpush1.msra.mxu0 0.0
    %807 = vmatprep.subr.mxu0 0.0
    %808 = vmatpush1.msra.mxu0 0.0
    %809 = vmatprep.subr.mxu0 0.0
    %810 = vmatpush1.msra.mxu0 0.0
    %811 = vmatprep.subr.mxu0 0.0
    %812 = vmatpush1.msra.mxu0 0.0
    %813 = vmatprep.subr.mxu0 0.0
    %814 = vmatpush1.msra.mxu0 0.0
    %815 = vmatprep.subr.mxu0 0.0
    %816 = vmatpush1.msra.mxu0 0.0
    %817 = vmatprep.subr.mxu0 0.0
    %818 = vmatpush1.msra.mxu0 0.0
    %819 = vmatprep.subr.mxu0 0.0
    %820 = vmatpush1.msra.mxu0 0.0
    %821 = vmatprep.mubr.f32.mxu0 0.0
    %822 = vmatmul.mubr.f32.gmra.mrb[0].mxu0 %v329
    %v823 = vpop.f32.mrb[0].mxu0
    %v824 = vadd.f32 0.0, %v823
    %v825 = vpop.f32.mrb[0].mxu0
    %826 = vdwg.mxu0
    %827 = vst [vmem:[%s8 + $0x8] sm:$0xff] %v824
    %s828 = scalar_lea.vmem %s6, 8
    %v829 = vld [vmem:[%s828] sm:$0xf]
    %s830 = scalar_lea.vmem %s3, 8
    %v831 = vld [vmem:[%s830] sm:$0xf]
    %832 = vmatprep.subr.bf16.mxu0 0
    %833 = vmatpush1.bf16.msra.mxu0 %v754
    %834 = vmatprep.subr.bf16.mxu0 0
    %835 = vmatpush1.bf16.msra.mxu0 0
    %836 = vmatprep.subr.bf16.mxu0 0
    %837 = vmatpush1.bf16.msra.mxu0 0
    %838 = vmatprep.subr.bf16.mxu0 0
    %839 = vmatpush1.bf16.msra.mxu0 0
    %840 = vmatprep.subr.bf16.mxu0 0
    %841 = vmatpush1.bf16.msra.mxu0 0
    %842 = vmatprep.subr.bf16.mxu0 0
    %843 = vmatpush1.bf16.msra.mxu0 0
    %844 = vmatprep.subr.bf16.mxu0 0
    %845 = vmatpush1.bf16.msra.mxu0 0
    %846 = vmatprep.subr.bf16.mxu0 0
    %847 = vmatpush1.bf16.msra.mxu0 0
    %848 = vmatprep.subr.bf16.mxu0 0
    %849 = vmatpush1.bf16.msra.mxu0 0
    %850 = vmatprep.subr.bf16.mxu0 0
    %851 = vmatpush1.bf16.msra.mxu0 0
    %852 = vmatprep.subr.bf16.mxu0 0
    %853 = vmatpush1.bf16.msra.mxu0 0
    %854 = vmatprep.subr.bf16.mxu0 0
    %855 = vmatpush1.bf16.msra.mxu0 0
    %856 = vmatprep.subr.bf16.mxu0 0
    %857 = vmatpush1.bf16.msra.mxu0 0
    %858 = vmatprep.subr.bf16.mxu0 0
    %859 = vmatpush1.bf16.msra.mxu0 0
    %860 = vmatprep.subr.bf16.mxu0 0
    %861 = vmatpush1.bf16.msra.mxu0 0
    %862 = vmatprep.subr.bf16.mxu0 0
    %863 = vmatpush1.bf16.msra.mxu0 0
    %864 = vmatprep.mubr.bf16.mxu0 0
    %865 = vmatmul.mubr.bf16.gmra.mrb[0].mxu0 %v75
    %v866 = vpop.f32.mrb[0].mxu0
    %v867 = vadd.f32 0.0, %v866
    %v868 = vpop.f32.mrb[0].mxu0
    %v869 = vpop.f32.mrb[0].mxu0
    %v870 = vadd.f32 0.0, %v869
    %v871 = vpop.f32.mrb[0].mxu0
    %872 = vdwg.mxu0
    %v873 = vpack.c.bf16 %v870, %v867
    %s874 = scalar_lea.vmem [#allocation2], 64
    %v875 = vld [vmem:[%s874] sm:$0xf]
    %v876 = vld [vmem:[%s874 + $0x4] sm:$0xf]
    %v877 = vld [vmem:[%s874 + $0x8] sm:$0xf]
    %v878 = vld [vmem:[%s874 + $0xc] sm:$0xf]
    %v879 = vld [vmem:[%s874 + $0x10] sm:$0xf]
    %v880 = vld [vmem:[%s874 + $0x14] sm:$0xf]
    %v881 = vld [vmem:[%s874 + $0x18] sm:$0xf]
    %v882 = vld [vmem:[%s874 + $0x1c] sm:$0xf]
    %v883 = vld [vmem:[%s874 + $0x20] sm:$0xf]
    %v884 = vld [vmem:[%s874 + $0x24] sm:$0xf]
    %v885 = vld [vmem:[%s874 + $0x28] sm:$0xf]
    %v886 = vld [vmem:[%s874 + $0x2c] sm:$0xf]
    %v887 = vld [vmem:[%s874 + $0x30] sm:$0xf]
    %v888 = vld [vmem:[%s874 + $0x34] sm:$0xf]
    %v889 = vld [vmem:[%s874 + $0x38] sm:$0xf]
    %v890 = vld [vmem:[%s874 + $0x3c] sm:$0xf]
    %v907 = vunpack.c.l.b16 %v875
    %v908 = vunpack.c.l.b16 %v876
    %v909 = vunpack.c.l.b16 %v877
    %v910 = vunpack.c.l.b16 %v878
    %v911 = vunpack.c.l.b16 %v879
    %v912 = vunpack.c.l.b16 %v880
    %v913 = vunpack.c.l.b16 %v881
    %v914 = vunpack.c.l.b16 %v882
    %v915 = vunpack.c.l.b16 %v883
    %v916 = vunpack.c.l.b16 %v884
    %v917 = vunpack.c.l.b16 %v885
    %v918 = vunpack.c.l.b16 %v886
    %v919 = vunpack.c.l.b16 %v887
    %v920 = vunpack.c.l.b16 %v888
    %v921 = vunpack.c.l.b16 %v889
    %v922 = vunpack.c.l.b16 %v890
    %v923 = vpack.c.b16 %v908, %v907
    %v924 = vpack.c.b16 %v910, %v909
    %v925 = vpack.c.b16 %v912, %v911
    %v926 = vpack.c.b16 %v914, %v913
    %v927 = vpack.c.b16 %v916, %v915
    %v928 = vpack.c.b16 %v918, %v917
    %v929 = vpack.c.b16 %v920, %v919
    %v930 = vpack.c.b16 %v922, %v921
    %939 = vmatprep.subr.bf16.mxu0 0
    %940 = vmatpush1.bf16.msra.mxu0 %v923
    %941 = vmatprep.subr.bf16.mxu0 0
    %942 = vmatpush1.bf16.msra.mxu0 %v924
    %943 = vmatprep.subr.bf16.mxu0 0
    %944 = vmatpush1.bf16.msra.mxu0 %v925
    %945 = vmatprep.subr.bf16.mxu0 0
    %946 = vmatpush1.bf16.msra.mxu0 %v926
    %947 = vmatprep.subr.bf16.mxu0 0
    %948 = vmatpush1.bf16.msra.mxu0 %v927
    %949 = vmatprep.subr.bf16.mxu0 0
    %950 = vmatpush1.bf16.msra.mxu0 %v928
    %951 = vmatprep.subr.bf16.mxu0 0
    %952 = vmatpush1.bf16.msra.mxu0 %v929
    %953 = vmatprep.subr.bf16.mxu0 0
    %954 = vmatpush1.bf16.msra.mxu0 %v930
    %955 = vmatprep.subr.bf16.mxu0 0
    %956 = vmatpush1.bf16.msra.mxu0 0
    %957 = vmatprep.subr.bf16.mxu0 0
    %958 = vmatpush1.bf16.msra.mxu0 0
    %959 = vmatprep.subr.bf16.mxu0 0
    %960 = vmatpush1.bf16.msra.mxu0 0
    %961 = vmatprep.subr.bf16.mxu0 0
    %962 = vmatpush1.bf16.msra.mxu0 0
    %963 = vmatprep.subr.bf16.mxu0 0
    %964 = vmatpush1.bf16.msra.mxu0 0
    %965 = vmatprep.subr.bf16.mxu0 0
    %966 = vmatpush1.bf16.msra.mxu0 0
    %967 = vmatprep.subr.bf16.mxu0 0
    %968 = vmatpush1.bf16.msra.mxu0 0
    %969 = vmatprep.subr.bf16.mxu0 0
    %970 = vmatpush1.bf16.msra.mxu0 0
    %971 = vmatprep.mubr.bf16.mxu0 0
    %972 = vmatmul.mubr.bf16.gmra.mrb[0].mxu0 %v873
    %v973 = vpop.f32.mrb[0].mxu0
    %v974 = vadd.f32 0.0, %v973
    %v975 = vpop.f32.mrb[0].mxu0
    %v976 = vpop.f32.mrb[0].mxu0
    %v977 = vadd.f32 0.0, %v976
    %v978 = vpop.f32.mrb[0].mxu0
    %979 = vdwg.mxu0
    %v981 = vsel %vm129, %v831, 0
    %983 = vmatprep.subr.bf16.mxu0 0
    %984 = vmatpush1.bf16.msra.mxu0 %v981
    %985 = vmatprep.subr.bf16.mxu0 0
    %986 = vmatpush1.bf16.msra.mxu0 0
    %987 = vmatprep.subr.bf16.mxu0 0
    %988 = vmatpush1.bf16.msra.mxu0 0
    %989 = vmatprep.subr.bf16.mxu0 0
    %990 = vmatpush1.bf16.msra.mxu0 0
    %991 = vmatprep.subr.bf16.mxu0 0
    %992 = vmatpush1.bf16.msra.mxu0 0
    %993 = vmatprep.subr.bf16.mxu0 0
    %994 = vmatpush1.bf16.msra.mxu0 0
    %995 = vmatprep.subr.bf16.mxu0 0
    %996 = vmatpush1.bf16.msra.mxu0 0
    %997 = vmatprep.subr.bf16.mxu0 0
    %998 = vmatpush1.bf16.msra.mxu0 0
    %999 = vmatprep.subr.bf16.mxu0 0
    %1000 = vmatpush1.bf16.msra.mxu0 0
    %1001 = vmatprep.subr.bf16.mxu0 0
    %1002 = vmatpush1.bf16.msra.mxu0 0
    %1003 = vmatprep.subr.bf16.mxu0 0
    %1004 = vmatpush1.bf16.msra.mxu0 0
    %1005 = vmatprep.subr.bf16.mxu0 0
    %1006 = vmatpush1.bf16.msra.mxu0 0
    %1007 = vmatprep.subr.bf16.mxu0 0
    %1008 = vmatpush1.bf16.msra.mxu0 0
    %1009 = vmatprep.subr.bf16.mxu0 0
    %1010 = vmatpush1.bf16.msra.mxu0 0
    %1011 = vmatprep.subr.bf16.mxu0 0
    %1012 = vmatpush1.bf16.msra.mxu0 0
    %1013 = vmatprep.subr.bf16.mxu0 0
    %1014 = vmatpush1.bf16.msra.mxu0 0
    %1015 = vmatprep.mubr.bf16.mxu0 0
    %1016 = vmatmul.mubr.bf16.gmra.mrb[0].mxu0 %v127
    %v1017 = vpop.f32.mrb[0].mxu0
    %v1018 = vadd.f32 %v974, %v1017
    %v1019 = vpop.f32.mrb[0].mxu0
    %v1020 = vpop.f32.mrb[0].mxu0
    %v1021 = vadd.f32 %v977, %v1020
    %v1022 = vpop.f32.mrb[0].mxu0
    %1023 = vdwg.mxu0
    %v1024 = vlaneseq
    %v1025 = vshrl.u32 %v1024, 7
    %v1026 = vsub.s32 0, %v1025
    %v1027 = vrot.slane %v829, %v1026
    %v1028 = vadd.f32 %v1018, %v1027
    %v1029 = vadd.f32 %v1021, %v1027
    %v1030 = vmax.f32 %v1028, 0.0
    %v1031 = vmax.f32 %v1029, 0.0
    %v1032 = vpack.c.bf16 %v1031, %v1030
    %s1033 = scalar_lea.vmem [#allocation4], 128
    %v1034 = vld [vmem:[%s1033] sm:$0xf]
    %v1035 = vld [vmem:[%s1033 + $0x4] sm:$0xf]
    %v1036 = vld [vmem:[%s1033 + $0x8] sm:$0xf]
    %v1037 = vld [vmem:[%s1033 + $0xc] sm:$0xf]
    %v1038 = vld [vmem:[%s1033 + $0x10] sm:$0xf]
    %v1039 = vld [vmem:[%s1033 + $0x14] sm:$0xf]
    %v1040 = vld [vmem:[%s1033 + $0x18] sm:$0xf]
    %v1041 = vld [vmem:[%s1033 + $0x1c] sm:$0xf]
    %v1042 = vld [vmem:[%s1033 + $0x20] sm:$0xf]
    %v1043 = vld [vmem:[%s1033 + $0x24] sm:$0xf]
    %v1044 = vld [vmem:[%s1033 + $0x28] sm:$0xf]
    %v1045 = vld [vmem:[%s1033 + $0x2c] sm:$0xf]
    %v1046 = vld [vmem:[%s1033 + $0x30] sm:$0xf]
    %v1047 = vld [vmem:[%s1033 + $0x34] sm:$0xf]
    %v1048 = vld [vmem:[%s1033 + $0x38] sm:$0xf]
    %v1049 = vld [vmem:[%s1033 + $0x3c] sm:$0xf]
    %v1050 = vlaneseq
    %v1051 = vshrl.u32 %v1050, 7
    %v1052 = vsub.s32 1, %v1051
    %v1053 = vrot.slane %v829, %v1052
    %v1070 = vunpack.c.l.b16 %v1034
    %v1071 = vunpack.c.l.b16 %v1035
    %v1072 = vunpack.c.l.b16 %v1036
    %v1073 = vunpack.c.l.b16 %v1037
    %v1074 = vunpack.c.l.b16 %v1038
    %v1075 = vunpack.c.l.b16 %v1039
    %v1076 = vunpack.c.l.b16 %v1040
    %v1077 = vunpack.c.l.b16 %v1041
    %v1078 = vunpack.c.l.b16 %v1042
    %v1079 = vunpack.c.l.b16 %v1043
    %v1080 = vunpack.c.l.b16 %v1044
    %v1081 = vunpack.c.l.b16 %v1045
    %v1082 = vunpack.c.l.b16 %v1046
    %v1083 = vunpack.c.l.b16 %v1047
    %v1084 = vunpack.c.l.b16 %v1048
    %v1085 = vunpack.c.l.b16 %v1049
    %v1086 = vpack.c.b16 %v1071, %v1070
    %v1087 = vpack.c.b16 %v1073, %v1072
    %v1088 = vpack.c.b16 %v1075, %v1074
    %v1089 = vpack.c.b16 %v1077, %v1076
    %v1090 = vpack.c.b16 %v1079, %v1078
    %v1091 = vpack.c.b16 %v1081, %v1080
    %v1092 = vpack.c.b16 %v1083, %v1082
    %v1093 = vpack.c.b16 %v1085, %v1084
    %1102 = vmatprep.subr.bf16.mxu0 0
    %1103 = vmatpush1.bf16.msra.mxu0 %v1086
    %1104 = vmatprep.subr.bf16.mxu0 0
    %1105 = vmatpush1.bf16.msra.mxu0 %v1087
    %1106 = vmatprep.subr.bf16.mxu0 0
    %1107 = vmatpush1.bf16.msra.mxu0 %v1088
    %1108 = vmatprep.subr.bf16.mxu0 0
    %1109 = vmatpush1.bf16.msra.mxu0 %v1089
    %1110 = vmatprep.subr.bf16.mxu0 0
    %1111 = vmatpush1.bf16.msra.mxu0 %v1090
    %1112 = vmatprep.subr.bf16.mxu0 0
    %1113 = vmatpush1.bf16.msra.mxu0 %v1091
    %1114 = vmatprep.subr.bf16.mxu0 0
    %1115 = vmatpush1.bf16.msra.mxu0 %v1092
    %1116 = vmatprep.subr.bf16.mxu0 0
    %1117 = vmatpush1.bf16.msra.mxu0 %v1093
    %1118 = vmatprep.subr.bf16.mxu0 0
    %1119 = vmatpush1.bf16.msra.mxu0 0
    %1120 = vmatprep.subr.bf16.mxu0 0
    %1121 = vmatpush1.bf16.msra.mxu0 0
    %1122 = vmatprep.subr.bf16.mxu0 0
    %1123 = vmatpush1.bf16.msra.mxu0 0
    %1124 = vmatprep.subr.bf16.mxu0 0
    %1125 = vmatpush1.bf16.msra.mxu0 0
    %1126 = vmatprep.subr.bf16.mxu0 0
    %1127 = vmatpush1.bf16.msra.mxu0 0
    %1128 = vmatprep.subr.bf16.mxu0 0
    %1129 = vmatpush1.bf16.msra.mxu0 0
    %1130 = vmatprep.subr.bf16.mxu0 0
    %1131 = vmatpush1.bf16.msra.mxu0 0
    %1132 = vmatprep.subr.bf16.mxu0 0
    %1133 = vmatpush1.bf16.msra.mxu0 0
    %1134 = vmatprep.mubr.bf16.mxu0 0
    %1135 = vmatmul.mubr.bf16.gmra.mrb[0].mxu0 %v1032
    %v1136 = vpop.f32.mrb[0].mxu0
    %v1137 = vadd.f32 %v1053, %v1136
    %v1138 = vpop.f32.mrb[0].mxu0
    %v1139 = vpop.f32.mrb[0].mxu0
    %v1140 = vadd.f32 %v1053, %v1139
    %v1141 = vpop.f32.mrb[0].mxu0
    %1142 = vdwg.mxu0
    %v1143 = vadd.f32 %v1137, %v1140
    %v1144 = vrot.slane %v1143, 4
    %v1145 = vadd.f32 %v1143, %v1144
    %v1146 = vrot.slane %v1145, 2
    %v1147 = vadd.f32 %v1145, %v1146
    %v1148 = vrot.slane %v1147, 1
    %v1149 = vadd.f32 %v1147, %v1148
    %v1150 = vmul.f32 %v1149, %v293
    %v1151 = vsub.f32 %v1137, %v1150
    %v1152 = vsub.f32 %v1140, %v1150
    %v1153 = vmul.f32 %v1151, %v1151
    %v1154 = vmul.f32 %v1152, %v1152
    %v1155 = vadd.f32 %v1153, %v1154
    %v1156 = vrot.slane %v1155, 4
    %v1157 = vadd.f32 %v1155, %v1156
    %v1158 = vrot.slane %v1157, 2
    %v1159 = vadd.f32 %v1157, %v1158
    %v1160 = vrot.slane %v1159, 1
    %v1161 = vadd.f32 %v1159, %v1160
    %v1162 = vmul.f32 %v1161, %v293
    %v1163 = vadd.f32 %v1162, 1e-05
    %v1164 = vrsqrt.pop %v1163
    %v1165 = vmul.f32 %v1151, %v1164
    %v1166 = vmul.f32 %v1152, %v1164
    %v1167 = vlaneseq
    %v1168 = vshrl.u32 %v1167, 7
    %v1169 = vsub.s32 2, %v1168
    %v1170 = vrot.slane %v829, %v1169
    %v1171 = vmul.f32 %v1165, %v1170
    %v1172 = vmul.f32 %v1166, %v1170
    %v1173 = vlaneseq
    %v1174 = vshrl.u32 %v1173, 7
    %v1175 = vsub.s32 3, %v1174
    %v1176 = vrot.slane %v829, %v1175
    %v1177 = vadd.f32 %v1171, %v1176
    %v1178 = vadd.f32 %v1172, %v1176
    %v1179 = vmax.f32 %v1177, 0.0
    %v1180 = vmax.f32 %v1178, 0.0
    %1181 = vst [vmem:[%s7 + $0x10] sm:$0xff] %v1179
    %1182 = vst [vmem:[%s7 + $0x28] sm:$0xff] %v1180
    %1183 = vmatprep.subr.mxu0 0.0
    %1184 = vmatpush1.msra.mxu0 %v1179
    %1185 = vmatprep.subr.mxu0 0.0
    %1186 = vmatpush1.msra.mxu0 %v1180
    %1187 = vmatprep.subr.mxu0 0.0
    %1188 = vmatpush1.msra.mxu0 0.0
    %1189 = vmatprep.subr.mxu0 0.0
    %1190 = vmatpush1.msra.mxu0 0.0
    %1191 = vmatprep.subr.mxu0 0.0
    %1192 = vmatpush1.msra.mxu0 0.0
    %1193 = vmatprep.subr.mxu0 0.0
    %1194 = vmatpush1.msra.mxu0 0.0
    %1195 = vmatprep.subr.mxu0 0.0
    %1196 = vmatpush1.msra.mxu0 0.0
    %1197 = vmatprep.subr.mxu0 0.0
    %1198 = vmatpush1.msra.mxu0 0.0
    %1199 = vmatprep.subr.mxu0 0.0
    %1200 = vmatpush1.msra.mxu0 0.0
    %1201 = vmatprep.subr.mxu0 0.0
    %1202 = vmatpush1.msra.mxu0 0.0
    %1203 = vmatprep.subr.mxu0 0.0
    %1204 = vmatpush1.msra.mxu0 0.0
    %1205 = vmatprep.subr.mxu0 0.0
    %1206 = vmatpush1.msra.mxu0 0.0
    %1207 = vmatprep.subr.mxu0 0.0
    %1208 = vmatpush1.msra.mxu0 0.0
    %1209 = vmatprep.subr.mxu0 0.0
    %1210 = vmatpush1.msra.mxu0 0.0
    %1211 = vmatprep.subr.mxu0 0.0
    %1212 = vmatpush1.msra.mxu0 0.0
    %1213 = vmatprep.subr.mxu0 0.0
    %1214 = vmatpush1.msra.mxu0 0.0
    %1215 = vmatprep.subr.mxu0 0.0
    %1216 = vmatpush1.msra.mxu0 0.0
    %1217 = vmatprep.subr.mxu0 0.0
    %1218 = vmatpush1.msra.mxu0 0.0
    %1219 = vmatprep.subr.mxu0 0.0
    %1220 = vmatpush1.msra.mxu0 0.0
    %1221 = vmatprep.subr.mxu0 0.0
    %1222 = vmatpush1.msra.mxu0 0.0
    %1223 = vmatprep.subr.mxu0 0.0
    %1224 = vmatpush1.msra.mxu0 0.0
    %1225 = vmatprep.subr.mxu0 0.0
    %1226 = vmatpush1.msra.mxu0 0.0
    %1227 = vmatprep.subr.mxu0 0.0
    %1228 = vmatpush1.msra.mxu0 0.0
    %1229 = vmatprep.subr.mxu0 0.0
    %1230 = vmatpush1.msra.mxu0 0.0
    %1231 = vmatprep.subr.mxu0 0.0
    %1232 = vmatpush1.msra.mxu0 0.0
    %1233 = vmatprep.subr.mxu0 0.0
    %1234 = vmatpush1.msra.mxu0 0.0
    %1235 = vmatprep.subr.mxu0 0.0
    %1236 = vmatpush1.msra.mxu0 0.0
    %1237 = vmatprep.subr.mxu0 0.0
    %1238 = vmatpush1.msra.mxu0 0.0
    %1239 = vmatprep.subr.mxu0 0.0
    %1240 = vmatpush1.msra.mxu0 0.0
    %1241 = vmatprep.subr.mxu0 0.0
    %1242 = vmatpush1.msra.mxu0 0.0
    %1243 = vmatprep.subr.mxu0 0.0
    %1244 = vmatpush1.msra.mxu0 0.0
    %1245 = vmatprep.subr.mxu0 0.0
    %1246 = vmatpush1.msra.mxu0 0.0
    %1247 = vmatprep.mubr.f32.mxu0 0.0
    %1248 = vmatmul.mubr.f32.gmra.mrb[0].mxu0 %v329
    %v1249 = vpop.f32.mrb[0].mxu0
    %v1250 = vadd.f32 0.0, %v1249
    %v1251 = vpop.f32.mrb[0].mxu0
    %1252 = vdwg.mxu0
    %1253 = vst [vmem:[%s8 + $0x10] sm:$0xff] %v1250
    // Predicated region
    $region38: #{graph_gsn_forward.1} parent=1 // pred_check
      _
    $region39: #{graph_gsn_forward.1} parent=1 // pred_check_branch
      %1255 = sbr.rel (0) target = $region41
    $region40: #{graph_gsn_forward.1} parent=1 // pred_region
      _
    $region41: #{graph_gsn_forward.1} parent=1 // pred_fallthru
      _
    // Predicated region
    $region42: #{graph_gsn_forward.1} parent=1 // pred_check
      _
    $region43: #{graph_gsn_forward.1} parent=1 // pred_check_branch
      %1257 = sbr.rel (0) target = $region45
    $region44: #{graph_gsn_forward.1} parent=1 // pred_region
      _
    $region45: #{graph_gsn_forward.1} parent=1 // pred_fallthru
      _
    // Predicated region
    $region46: #{graph_gsn_forward.1} parent=1 // pred_check
      _
    $region47: #{graph_gsn_forward.1} parent=1 // pred_check_branch
      %1259 = sbr.rel (0) target = $region49
    $region48: #{graph_gsn_forward.1} parent=1 // pred_region
      _
    $region49: #{graph_gsn_forward.1} parent=1 // pred_fallthru
      _
    // Predicated region
    $region50: #{graph_gsn_forward.1} parent=1 // pred_check
      _
    $region51: #{graph_gsn_forward.1} parent=1 // pred_check_branch
      %1261 = sbr.rel (0) target = $region53
    $region52: #{graph_gsn_forward.1} parent=1 // pred_region
      _
    $region53: #{graph_gsn_forward.1} parent=1 // pred_fallthru
      _
    %1262 = vsyncpa [#allocation3], 1
    %1263 = vsyncpa [#allocation5], 1

</llo_original>
